<compile_context>
chip_gen: v6e
topology: v6e:2x2x1
jax: 0.10.0
libtpu: 0.0.40
codegen_flags: <defaults>
</compile_context>

<pallas_src>
import jax
import jax.numpy as jnp
import numpy as np
from jax import lax
from jax.experimental import pallas as pl
from jax.experimental.pallas import tpu as pltpu

# --- constants replacing the module-level globals of the PyTorch file ---
N_LINKS = 8
NOISE_POWER = 1e-3
TX_POWER = 1.0
SINR_GAP = 1.0
N_REALIZATIONS = 1000              # Robust_Net.n_realizations

IN_DIM = N_LINKS * N_LINKS         # 64
HIDDEN = 6 * N_LINKS * N_LINKS     # 384
PC_PAD = 128                       # lane-dense padded width of fc_5 / pc output
BATCH_TILE = 256                   # max batch rows per grid step (MLP kernel)
ROW_TILE = 512                     # rows per grid step (SINR kernel)


def _round_up(x, m):
    return (x + m - 1) // m * m


# ----------------------------------------------------------------------------- kernels
def _power_control_kernel(x_ref, mean_ref, inv_std_ref,
                          w1_ref, b1_ref, w2_ref, b2_ref, w3_ref, b3_ref,
                          w4_ref, b4_ref, w5_ref, b5_ref, pc_ref):
    """(Bt, 64) -> (Bt, 128) padded power control; weights resident bf16, f32 accumulate."""
    h = (x_ref[...] - mean_ref[...]) * inv_std_ref[...]            # input_processing
    for w_ref, b_ref in ((w1_ref, b1_ref), (w2_ref, b2_ref),
                         (w3_ref, b3_ref), (w4_ref, b4_ref)):
        h = jnp.maximum(
            jnp.dot(h.astype(jnp.bfloat16), w_ref[...],
                    preferred_element_type=jnp.float32) + b_ref[...], 0.0)
    logits = jnp.dot(h.astype(jnp.bfloat16), w5_ref[...],
                     preferred_element_type=jnp.float32) + b5_ref[...]
    # sigmoid = exp (EUP) + approximate reciprocal (EUP) -> divides stay off the VALU
    pc_ref[...] = pl.reciprocal(1.0 + jnp.exp(-logits), approx=True)


def _sinr_min_kernel(csi_ref, pc_ref, out_ref):
    """Per-row SINR -> rate -> min over links on flattened (rows, 64) faded channels."""
    x = csi_ref[...]                                               # (T, 64) f32
    pc = pc_ref[...]                                               # (T, 8)  f32

    # Constant 0/1 selector matrices built from iota (flat index k = 8*i + j):
    #   d_sel[k, i] = 1 iff j == i                 -> dl  = x @ d_sel        (diagonal)
    #   s_sel[k, i] = 1 iff row == i and j != i    -> den = (x*pct) @ s_sel  (off-diag sums)
    #   t_bc [j, k] = 1 iff k % 8 == j             -> pct = pc @ t_bc        (lane broadcast)
    k_idx = lax.broadcasted_iota(jnp.int32, (IN_DIM, N_LINKS), 0)
    i_idx = lax.broadcasted_iota(jnp.int32, (IN_DIM, N_LINKS), 1)
    row = k_idx // N_LINKS
    col = k_idx % N_LINKS
    d_sel = ((row == i_idx) & (col == i_idx)).astype(jnp.float32)
    s_sel = ((row == i_idx) & (col != i_idx)).astype(jnp.float32)
    j_idx = lax.broadcasted_iota(jnp.int32, (N_LINKS, IN_DIM), 0)
    m_idx = lax.broadcasted_iota(jnp.int32, (N_LINKS, IN_DIM), 1)
    t_bc = (m_idx % N_LINKS == j_idx).astype(jnp.float32)

    dl = jnp.dot(x, d_sel, preferred_element_type=jnp.float32)             # (T, 8)
    pct = jnp.dot(pc, t_bc, preferred_element_type=jnp.float32)            # (T, 64)
    den = jnp.dot(x * pct, s_sel, preferred_element_type=jnp.float32) \
        + NOISE_POWER / TX_POWER
    sinrs = (pc * dl) / (den * SINR_GAP)
    rates = jnp.log(1.0 + sinrs)
    out_ref[...] = jnp.min(rates, axis=1, keepdims=True)                   # (T, 1)


# ----------------------------------------------------------------------------- wrappers
def _compute_power_control(x, params):
    """x: (B, 64) f32 -> pc: (B, N_LINKS) f32 via a batch-gridded Pallas kernel."""
    b = x.shape[0]
    tb = min(BATCH_TILE, _round_up(b, 8))
    bp = _round_up(b, tb)
    if bp != b:
        x = jnp.pad(x, ((0, bp - b), (0, 0)))

    const = lambda i: (0, 0)                     # weights / stats DMA'd once, stay resident
    in_specs = [pl.BlockSpec((tb, IN_DIM), lambda i: (i, 0)),
                pl.BlockSpec((1, IN_DIM), const),          # mean
                pl.BlockSpec((1, IN_DIM), const)]          # 1/std
    layer_dims = [(IN_DIM, HIDDEN), (HIDDEN, HIDDEN), (HIDDEN, HIDDEN),
                  (HIDDEN, HIDDEN), (HIDDEN, PC_PAD)]
    for fan_in, fan_out in layer_dims:
        in_specs.append(pl.BlockSpec((fan_in, fan_out), const))   # weight (bf16)
        in_specs.append(pl.BlockSpec((1, fan_out), const))        # bias   (f32)

    pc_pad = pl.pallas_call(
        _power_control_kernel,
        grid=(bp // tb,),
        in_specs=in_specs,
        out_specs=pl.BlockSpec((tb, PC_PAD), lambda i: (i, 0)),
        out_shape=jax.ShapeDtypeStruct((bp, PC_PAD), jnp.float32),
        compiler_params=pltpu.CompilerParams(
            dimension_semantics=("parallel",),
            vmem_limit_bytes=32 * 1024 * 1024),
    )(x, params["mean"], params["inv_std"],
      params["w1"], params["b1"], params["w2"], params["b2"],
      params["w3"], params["b3"], params["w4"], params["b4"],
      params["w5"], params["b5"])
    return pc_pad[:b, :N_LINKS]


def _compute_min_rates(csi, pc):
    """csi: (R, B, N, N), pc: (B, N) -> min-over-links rates, shape (R, B)."""
    r, b = csi.shape[0], csi.shape[1]
    rows = r * b
    csi_flat = csi.reshape(rows, IN_DIM)
    pc_rep = jnp.broadcast_to(pc[None], (r, b, N_LINKS)).reshape(rows, N_LINKS)

    tr = min(ROW_TILE, _round_up(rows, 8))
    rows_p = _round_up(rows, tr)
    if rows_p != rows:
        csi_flat = jnp.pad(csi_flat, ((0, rows_p - rows), (0, 0)))
        pc_rep = jnp.pad(pc_rep, ((0, rows_p - rows), (0, 0)))

    min_rates = pl.pallas_call(
        _sinr_min_kernel,
        grid=(rows_p // tr,),
        in_specs=[pl.BlockSpec((tr, IN_DIM), lambda i: (i, 0)),
                  pl.BlockSpec((tr, N_LINKS), lambda i: (i, 0))],
        out_specs=pl.BlockSpec((tr, 1), lambda i: (i, 0)),
        out_shape=jax.ShapeDtypeStruct((rows_p, 1), jnp.float32),
        compiler_params=pltpu.CompilerParams(
            dimension_semantics=("parallel",),
            vmem_limit_bytes=32 * 1024 * 1024),
    )(csi_flat, pc_rep)
    return min_rates[:rows, 0].reshape(r, b)


def _add_fadings(pl_in, key, n_realizations):
    """Robust_Net.add_fadings: lognormal shadowing (8 dB std) * Rayleigh fast fading."""
    k_shadow, k_real, k_imag = jax.random.split(key, 3)
    shape = (n_realizations,) + pl_in.shape
    shadow = jnp.power(10.0, jax.random.normal(k_shadow, shape, jnp.float32) * (8.0 / 10.0))
    h_real = jax.random.normal(k_real, shape, jnp.float32)
    h_imag = jax.random.normal(k_imag, shape, jnp.float32)
    ff = (h_real ** 2 + h_imag ** 2) * 0.5
    return pl_in[None] * shadow * ff


def robust_net_forward(pl_in, params, fading_key, n_realizations=N_REALIZATIONS):
    """pl_in: (B, N, N) f32.  Returns (mean of per-batch 10%-quantile min-rate, pc)."""
    b = pl_in.shape[0]
    x = pl_in.reshape(b, IN_DIM)
    pc = _compute_power_control(x, params)                         # (B, N)
    csi = _add_fadings(pl_in, fading_key, n_realizations)          # (R, B, N, N)
    min_rates = _compute_min_rates(csi, pc)                        # (R, B)
    # TODO(synk): torch.quantile (sort over realizations) has no clean Pallas
    # equivalent; quantile + batch mean are done in plain JAX on per-row kernel outputs.
    objectives = jnp.quantile(min_rates, 0.1, axis=0)              # (B,)
    return jnp.mean(objectives), pc


# ----------------------------------------------------------------------------- params / ref
def init_params(key):
    """Deterministic synthetic parameters (PyTorch Linear-style uniform init).

    Weights are stored bf16 (MXU-native on v6e/v7x); biases / mean / 1-std stay f32.
    fc_5 is zero-padded from N_LINKS to PC_PAD lanes so the pc store is lane-dense.
    """
    dims = [(IN_DIM, HIDDEN), (HIDDEN, HIDDEN), (HIDDEN, HIDDEN),
            (HIDDEN, HIDDEN), (HIDDEN, N_LINKS)]
    params = {}
    keys = jax.random.split(key, 2 * len(dims) + 2)
    for idx, (fan_in, fan_out) in enumerate(dims):
        bound = 1.0 / np.sqrt(fan_in)
        w = jax.random.uniform(keys[2 * idx], (fan_in, fan_out), jnp.float32, -bound, bound)
        bias = jax.random.uniform(keys[2 * idx + 1], (1, fan_out), jnp.float32, -bound, bound)
        if fan_out == N_LINKS:                     # pad fc_5 to a lane-dense width
            w = jnp.pad(w, ((0, 0), (0, PC_PAD - N_LINKS)))
            bias = jnp.pad(bias, ((0, 0), (0, PC_PAD - N_LINKS)))
        params[f"w{idx + 1}"] = w.astype(jnp.bfloat16)
        params[f"b{idx + 1}"] = bias
    params["mean"] = jax.random.normal(keys[-2], (1, IN_DIM), jnp.float32) * 0.1
    std = jnp.abs(jax.random.normal(keys[-1], (1, IN_DIM), jnp.float32)) + 0.5
    params["inv_std"] = 1.0 / std                  # multiply instead of per-row divide
    return params


def _reference_forward(pl_in, params, fading_key, n_realizations=N_REALIZATIONS):
    """Pure-JAX mirror of Robust_Net.forward (same bf16 matmul path, exact sigmoid)."""
    b = pl_in.shape[0]
    x = pl_in.reshape(b, IN_DIM)
    h = (x - params["mean"]) * params["inv_std"]
    for i in range(1, 5):
        h = jnp.maximum(
            jnp.dot(h.astype(jnp.bfloat16), params[f"w{i}"],
                    preferred_element_type=jnp.float32) + params[f"b{i}"], 0.0)
    logits = (jnp.dot(h.astype(jnp.bfloat16), params["w5"],
                      preferred_element_type=jnp.float32) + params["b5"])[:, :N_LINKS]
    pc = 1.0 / (1.0 + jnp.exp(-logits))

    csi = _add_fadings(pl_in, fading_key, n_realizations)          # (R, B, N, N)
    dl = jnp.diagonal(csi, axis1=2, axis2=3)                       # (R, B, N)
    cl = csi * (1.0 - jnp.eye(N_LINKS, dtype=jnp.float32))
    num = pc[None] * dl
    den = jnp.einsum("rbij,bj->rbi", cl, pc) + NOISE_POWER / TX_POWER
    rates = jnp.log(1.0 + num / (den * SINR_GAP))
    min_rates = jnp.min(rates, axis=-1)                            # (R, B)
    objectives = jnp.quantile(min_rates, 0.1, axis=0)
    return jnp.mean(objectives), pc


if __name__ == "__main__":
    key = jax.random.PRNGKey(0)
    k_params, k_input, k_fading = jax.random.split(key, 3)
    params = init_params(k_params)

    batch = 2
    # synthetic positive channel ("path loss") matrices
    pl_in = jax.random.uniform(k_input, (batch, N_LINKS, N_LINKS), jnp.float32, 0.05, 1.0)

    mean_obj, pc = robust_net_forward(pl_in, params, k_fading)
    jax.block_until_ready((mean_obj, pc))

    ref_mean, ref_pc = _reference_forward(pl_in, params, k_fading)
    np.testing.assert_allclose(np.asarray(pc), np.asarray(ref_pc), rtol=1e-2, atol=2e-3)
    np.testing.assert_allclose(np.asarray(mean_obj), np.asarray(ref_mean),
                               rtol=2e-2, atol=1e-4)
    print("KERNEL_OK")
</pallas_src>

<mosaic_0001>
module attributes {stable_mosaic.version = 11 : i64} {
  func.func @_power_control_kernel(%arg0: i32, %arg1: memref<8x64xf32, #tpu.memory_space<vmem>>, %arg2: memref<1x64xf32, #tpu.memory_space<vmem>>, %arg3: memref<1x64xf32, #tpu.memory_space<vmem>>, %arg4: memref<64x384xbf16, #tpu.memory_space<vmem>>, %arg5: memref<1x384xf32, #tpu.memory_space<vmem>>, %arg6: memref<384x384xbf16, #tpu.memory_space<vmem>>, %arg7: memref<1x384xf32, #tpu.memory_space<vmem>>, %arg8: memref<384x384xbf16, #tpu.memory_space<vmem>>, %arg9: memref<1x384xf32, #tpu.memory_space<vmem>>, %arg10: memref<384x384xbf16, #tpu.memory_space<vmem>>, %arg11: memref<1x384xf32, #tpu.memory_space<vmem>>, %arg12: memref<384x128xbf16, #tpu.memory_space<vmem>>, %arg13: memref<1x128xf32, #tpu.memory_space<vmem>>, %arg14: memref<8x128xf32, #tpu.memory_space<vmem>>) attributes {dimension_semantics = [#tpu.dimension_semantics<parallel>], iteration_bounds = array<i64: 1>, scalar_prefetch = 0 : i64, scratch_operands = 0 : i64, tpu.core_type = #tpu.core_type<tc>, window_params = [{transform_indices = @transform_0, window_bounds = array<i64: 8, 64>}, {pipeline_mode = #tpu.pipeline_mode<synchronous>, transform_indices = @transform_1, window_bounds = array<i64: 1, 64>}, {pipeline_mode = #tpu.pipeline_mode<synchronous>, transform_indices = @transform_2, window_bounds = array<i64: 1, 64>}, {pipeline_mode = #tpu.pipeline_mode<synchronous>, transform_indices = @transform_3, window_bounds = array<i64: 64, 384>}, {pipeline_mode = #tpu.pipeline_mode<synchronous>, transform_indices = @transform_4, window_bounds = array<i64: 1, 384>}, {pipeline_mode = #tpu.pipeline_mode<synchronous>, transform_indices = @transform_5, window_bounds = array<i64: 384, 384>}, {pipeline_mode = #tpu.pipeline_mode<synchronous>, transform_indices = @transform_6, window_bounds = array<i64: 1, 384>}, {pipeline_mode = #tpu.pipeline_mode<synchronous>, transform_indices = @transform_7, window_bounds = array<i64: 384, 384>}, {pipeline_mode = #tpu.pipeline_mode<synchronous>, transform_indices = @transform_8, window_bounds = array<i64: 1, 384>}, {pipeline_mode = #tpu.pipeline_mode<synchronous>, transform_indices = @transform_9, window_bounds = array<i64: 384, 384>}, {pipeline_mode = #tpu.pipeline_mode<synchronous>, transform_indices = @transform_10, window_bounds = array<i64: 1, 384>}, {pipeline_mode = #tpu.pipeline_mode<synchronous>, transform_indices = @transform_11, window_bounds = array<i64: 384, 128>}, {pipeline_mode = #tpu.pipeline_mode<synchronous>, transform_indices = @transform_12, window_bounds = array<i64: 1, 128>}, {transform_indices = @transform_13, window_bounds = array<i64: 8, 128>}]} {
    %c0 = arith.constant 0 : index
    %c0_0 = arith.constant 0 : index
    %0 = vector.load %arg1[%c0, %c0_0] : memref<8x64xf32, #tpu.memory_space<vmem>>, vector<8x64xf32>
    %c0_1 = arith.constant 0 : index
    %c0_2 = arith.constant 0 : index
    %1 = vector.load %arg2[%c0_1, %c0_2] : memref<1x64xf32, #tpu.memory_space<vmem>>, vector<1x64xf32>
    %2 = vector.broadcast %1 : vector<1x64xf32> to vector<8x64xf32>
    %3 = arith.subf %0, %2 : vector<8x64xf32>
    %c0_3 = arith.constant 0 : index
    %c0_4 = arith.constant 0 : index
    %4 = vector.load %arg3[%c0_3, %c0_4] : memref<1x64xf32, #tpu.memory_space<vmem>>, vector<1x64xf32>
    %5 = vector.broadcast %4 : vector<1x64xf32> to vector<8x64xf32>
    %6 = arith.mulf %3, %5 : vector<8x64xf32>
    %7 = arith.truncf %6 : vector<8x64xf32> to vector<8x64xbf16>
    %c0_5 = arith.constant 0 : index
    %c0_6 = arith.constant 0 : index
    %8 = vector.load %arg4[%c0_5, %c0_6] : memref<64x384xbf16, #tpu.memory_space<vmem>>, vector<64x384xbf16>
    %cst = arith.constant dense<0.000000e+00> : vector<8x384xf32>
    %9 = tpu.matmul %7, %8, %cst {dimension_numbers = #tpu.dot_dimension_numbers<[1], [0], [0], [1], [0, 0, 1, 1], [], []>} : vector<8x64xbf16>, vector<64x384xbf16>, vector<8x384xf32> -> vector<8x384xf32>
    %c0_7 = arith.constant 0 : index
    %c0_8 = arith.constant 0 : index
    %10 = vector.load %arg5[%c0_7, %c0_8] : memref<1x384xf32, #tpu.memory_space<vmem>>, vector<1x384xf32>
    %11 = vector.broadcast %10 : vector<1x384xf32> to vector<8x384xf32>
    %12 = arith.addf %9, %11 : vector<8x384xf32>
    %cst_9 = arith.constant 0.000000e+00 : f32
    %13 = vector.broadcast %cst_9 : f32 to vector<8x384xf32>
    %14 = arith.maximumf %12, %13 : vector<8x384xf32>
    %15 = arith.truncf %14 : vector<8x384xf32> to vector<8x384xbf16>
    %c0_10 = arith.constant 0 : index
    %c0_11 = arith.constant 0 : index
    %16 = vector.load %arg6[%c0_10, %c0_11] : memref<384x384xbf16, #tpu.memory_space<vmem>>, vector<384x384xbf16>
    %cst_12 = arith.constant dense<0.000000e+00> : vector<8x384xf32>
    %17 = tpu.matmul %15, %16, %cst_12 {dimension_numbers = #tpu.dot_dimension_numbers<[1], [0], [0], [1], [0, 0, 1, 1], [], []>} : vector<8x384xbf16>, vector<384x384xbf16>, vector<8x384xf32> -> vector<8x384xf32>
    %c0_13 = arith.constant 0 : index
    %c0_14 = arith.constant 0 : index
    %18 = vector.load %arg7[%c0_13, %c0_14] : memref<1x384xf32, #tpu.memory_space<vmem>>, vector<1x384xf32>
    %19 = vector.broadcast %18 : vector<1x384xf32> to vector<8x384xf32>
    %20 = arith.addf %17, %19 : vector<8x384xf32>
    %cst_15 = arith.constant 0.000000e+00 : f32
    %21 = vector.broadcast %cst_15 : f32 to vector<8x384xf32>
    %22 = arith.maximumf %20, %21 : vector<8x384xf32>
    %23 = arith.truncf %22 : vector<8x384xf32> to vector<8x384xbf16>
    %c0_16 = arith.constant 0 : index
    %c0_17 = arith.constant 0 : index
    %24 = vector.load %arg8[%c0_16, %c0_17] : memref<384x384xbf16, #tpu.memory_space<vmem>>, vector<384x384xbf16>
    %cst_18 = arith.constant dense<0.000000e+00> : vector<8x384xf32>
    %25 = tpu.matmul %23, %24, %cst_18 {dimension_numbers = #tpu.dot_dimension_numbers<[1], [0], [0], [1], [0, 0, 1, 1], [], []>} : vector<8x384xbf16>, vector<384x384xbf16>, vector<8x384xf32> -> vector<8x384xf32>
    %c0_19 = arith.constant 0 : index
    %c0_20 = arith.constant 0 : index
    %26 = vector.load %arg9[%c0_19, %c0_20] : memref<1x384xf32, #tpu.memory_space<vmem>>, vector<1x384xf32>
    %27 = vector.broadcast %26 : vector<1x384xf32> to vector<8x384xf32>
    %28 = arith.addf %25, %27 : vector<8x384xf32>
    %cst_21 = arith.constant 0.000000e+00 : f32
    %29 = vector.broadcast %cst_21 : f32 to vector<8x384xf32>
    %30 = arith.maximumf %28, %29 : vector<8x384xf32>
    %31 = arith.truncf %30 : vector<8x384xf32> to vector<8x384xbf16>
    %c0_22 = arith.constant 0 : index
    %c0_23 = arith.constant 0 : index
    %32 = vector.load %arg10[%c0_22, %c0_23] : memref<384x384xbf16, #tpu.memory_space<vmem>>, vector<384x384xbf16>
    %cst_24 = arith.constant dense<0.000000e+00> : vector<8x384xf32>
    %33 = tpu.matmul %31, %32, %cst_24 {dimension_numbers = #tpu.dot_dimension_numbers<[1], [0], [0], [1], [0, 0, 1, 1], [], []>} : vector<8x384xbf16>, vector<384x384xbf16>, vector<8x384xf32> -> vector<8x384xf32>
    %c0_25 = arith.constant 0 : index
    %c0_26 = arith.constant 0 : index
    %34 = vector.load %arg11[%c0_25, %c0_26] : memref<1x384xf32, #tpu.memory_space<vmem>>, vector<1x384xf32>
    %35 = vector.broadcast %34 : vector<1x384xf32> to vector<8x384xf32>
    %36 = arith.addf %33, %35 : vector<8x384xf32>
    %cst_27 = arith.constant 0.000000e+00 : f32
    %37 = vector.broadcast %cst_27 : f32 to vector<8x384xf32>
    %38 = arith.maximumf %36, %37 : vector<8x384xf32>
    %39 = arith.truncf %38 : vector<8x384xf32> to vector<8x384xbf16>
    %c0_28 = arith.constant 0 : index
    %c0_29 = arith.constant 0 : index
    %40 = vector.load %arg12[%c0_28, %c0_29] : memref<384x128xbf16, #tpu.memory_space<vmem>>, vector<384x128xbf16>
    %cst_30 = arith.constant dense<0.000000e+00> : vector<8x128xf32>
    %41 = tpu.matmul %39, %40, %cst_30 {dimension_numbers = #tpu.dot_dimension_numbers<[1], [0], [0], [1], [0, 0, 1, 1], [], []>} : vector<8x384xbf16>, vector<384x128xbf16>, vector<8x128xf32> -> vector<8x128xf32>
    %c0_31 = arith.constant 0 : index
    %c0_32 = arith.constant 0 : index
    %42 = vector.load %arg13[%c0_31, %c0_32] : memref<1x128xf32, #tpu.memory_space<vmem>>, vector<1x128xf32>
    %43 = vector.broadcast %42 : vector<1x128xf32> to vector<8x128xf32>
    %44 = arith.addf %41, %43 : vector<8x128xf32>
    %cst_33 = arith.constant 0.000000e+00 : f32
    %45 = vector.broadcast %cst_33 : f32 to vector<8x128xf32>
    %46 = arith.subf %45, %44 : vector<8x128xf32>
    %47 = math.exp %46 : vector<8x128xf32>
    %cst_34 = arith.constant 1.000000e+00 : f32
    %48 = vector.broadcast %cst_34 : f32 to vector<8x128xf32>
    %49 = arith.addf %48, %47 : vector<8x128xf32>
    %50 = tpu.reciprocal %49 {approx = true} : vector<8x128xf32> -> vector<8x128xf32>
    %c0_35 = arith.constant 0 : index
    %c0_36 = arith.constant 0 : index
    %51 = vector.load %arg14[%c0_35, %c0_36] : memref<8x128xf32, #tpu.memory_space<vmem>>, vector<8x128xf32>
    tpu.vector_store %arg14[%c0_35, %c0_36], %50 {strides = array<i32>} : memref<8x128xf32, #tpu.memory_space<vmem>>, vector<8x128xf32>,
    return
  }
  func.func @transform_0(%arg0: i32) -> (i32, i32) {
    %c0_i32 = arith.constant 0 : i32
    %c0_i32_0 = arith.constant 0 : i32
    return %arg0, %c0_i32 : i32, i32
  }
  func.func @transform_1(%arg0: i32) -> (i32, i32) {
    %c0_i32 = arith.constant 0 : i32
    %c0_i32_0 = arith.constant 0 : i32
    %c0_i32_1 = arith.constant 0 : i32
    return %c0_i32, %c0_i32_0 : i32, i32
  }
  func.func @transform_2(%arg0: i32) -> (i32, i32) {
    %c0_i32 = arith.constant 0 : i32
    %c0_i32_0 = arith.constant 0 : i32
    %c0_i32_1 = arith.constant 0 : i32
    return %c0_i32, %c0_i32_0 : i32, i32
  }
  func.func @transform_3(%arg0: i32) -> (i32, i32) {
    %c0_i32 = arith.constant 0 : i32
    %c0_i32_0 = arith.constant 0 : i32
    %c0_i32_1 = arith.constant 0 : i32
    return %c0_i32, %c0_i32_0 : i32, i32
  }
  func.func @transform_4(%arg0: i32) -> (i32, i32) {
    %c0_i32 = arith.constant 0 : i32
    %c0_i32_0 = arith.constant 0 : i32
    %c0_i32_1 = arith.constant 0 : i32
    return %c0_i32, %c0_i32_0 : i32, i32
  }
  func.func @transform_5(%arg0: i32) -> (i32, i32) {
    %c0_i32 = arith.constant 0 : i32
    %c0_i32_0 = arith.constant 0 : i32
    %c0_i32_1 = arith.constant 0 : i32
    return %c0_i32, %c0_i32_0 : i32, i32
  }
  func.func @transform_6(%arg0: i32) -> (i32, i32) {
    %c0_i32 = arith.constant 0 : i32
    %c0_i32_0 = arith.constant 0 : i32
    %c0_i32_1 = arith.constant 0 : i32
    return %c0_i32, %c0_i32_0 : i32, i32
  }
  func.func @transform_7(%arg0: i32) -> (i32, i32) {
    %c0_i32 = arith.constant 0 : i32
    %c0_i32_0 = arith.constant 0 : i32
    %c0_i32_1 = arith.constant 0 : i32
    return %c0_i32, %c0_i32_0 : i32, i32
  }
  func.func @transform_8(%arg0: i32) -> (i32, i32) {
    %c0_i32 = arith.constant 0 : i32
    %c0_i32_0 = arith.constant 0 : i32
    %c0_i32_1 = arith.constant 0 : i32
    return %c0_i32, %c0_i32_0 : i32, i32
  }
  func.func @transform_9(%arg0: i32) -> (i32, i32) {
    %c0_i32 = arith.constant 0 : i32
    %c0_i32_0 = arith.constant 0 : i32
    %c0_i32_1 = arith.constant 0 : i32
    return %c0_i32, %c0_i32_0 : i32, i32
  }
  func.func @transform_10(%arg0: i32) -> (i32, i32) {
    %c0_i32 = arith.constant 0 : i32
    %c0_i32_0 = arith.constant 0 : i32
    %c0_i32_1 = arith.constant 0 : i32
    return %c0_i32, %c0_i32_0 : i32, i32
  }
  func.func @transform_11(%arg0: i32) -> (i32, i32) {
    %c0_i32 = arith.constant 0 : i32
    %c0_i32_0 = arith.constant 0 : i32
    %c0_i32_1 = arith.constant 0 : i32
    return %c0_i32, %c0_i32_0 : i32, i32
  }
  func.func @transform_12(%arg0: i32) -> (i32, i32) {
    %c0_i32 = arith.constant 0 : i32
    %c0_i32_0 = arith.constant 0 : i32
    %c0_i32_1 = arith.constant 0 : i32
    return %c0_i32, %c0_i32_0 : i32, i32
  }
  func.func @transform_13(%arg0: i32) -> (i32, i32) {
    %c0_i32 = arith.constant 0 : i32
    %c0_i32_0 = arith.constant 0 : i32
    return %arg0, %c0_i32 : i32, i32
  }
}

</mosaic_0001>

<llo_original>
// kernel: tpu_custom_call.1
$region0: #{tpu_custom_call.1}
  #allocation0 [shape = 'u32[]', space=smem, size = 0x4, offset = 0x4, fixed_abs, tag = 'smem constant byte address 0x4 - core index']
  #allocation1 [shape = 'u32[144,128]{1,0:T(1,128)}', space=vmem, size = 0x12000, scoped, tag = 'internal scratch']
  %s0 = inlined_call_operand.hbm [shape: f32[8,64], index: 0, kind: input, shape index: {}]
  %s1 = inlined_call_operand.hbm [shape: f32[1,64], index: 1, kind: input, shape index: {}]
  %s2 = inlined_call_operand.hbm [shape: f32[1,64], index: 2, kind: input, shape index: {}]
  %s3 = inlined_call_operand.hbm [shape: bf16[64,384], index: 3, kind: input, shape index: {}]
  %s4 = inlined_call_operand.vmem [shape: f32[1,384], index: 4, kind: input, shape index: {}]
  %s5 = inlined_call_operand.hbm [shape: bf16[384,384], index: 5, kind: input, shape index: {}]
  %s6 = inlined_call_operand.vmem [shape: f32[1,384], index: 6, kind: input, shape index: {}]
  %s7 = inlined_call_operand.hbm [shape: bf16[384,384], index: 7, kind: input, shape index: {}]
  %s8 = inlined_call_operand.vmem [shape: f32[1,384], index: 8, kind: input, shape index: {}]
  %s9 = inlined_call_operand.hbm [shape: bf16[384,384], index: 9, kind: input, shape index: {}]
  %s10 = inlined_call_operand.vmem [shape: f32[1,384], index: 10, kind: input, shape index: {}]
  %s11 = inlined_call_operand.hbm [shape: bf16[384,128], index: 11, kind: input, shape index: {}]
  %s12 = inlined_call_operand.vmem [shape: f32[1,128], index: 12, kind: input, shape index: {}]
  %s13 = inlined_call_operand.hbm [shape: f32[8,128], index: 13, kind: output, shape index: {}]
  %s14 = sld [smem:[#allocation0]]
  $region94: #{tpu_custom_call.1} parent=0
    _
  %s16 = ssub.s32 1, %s14
  %s17 = scalar_select 0, %s16, %s14
  $region1: #{tpu_custom_call.1} parent=0
    #allocation2 [shape = 'u8[4096]{0}', space=vmem, size = 0x1000, scoped, tag = 'input window, operand 0, single buffered']
    #allocation3 [shape = 's32[1]{0}', space=sflag, size = 0x4, scoped, tag = 'scoped memory for tpu_custom_call.1']
    #allocation4 [shape = 's32[1]{0}', space=sflag, size = 0x4, scoped, tag = 'scoped memory for tpu_custom_call.1']
    #allocation5 [shape = 'u8[512]{0}', space=vmem, size = 0x400, scoped, tag = 'input window, operand 1, single buffered']
    #allocation6 [shape = 's32[1]{0}', space=sflag, size = 0x4, scoped, tag = 'scoped memory for tpu_custom_call.1']
    #allocation7 [shape = 'u8[512]{0}', space=vmem, size = 0x400, scoped, tag = 'input window, operand 2, single buffered']
    #allocation8 [shape = 'u8[49152]{0}', space=vmem, size = 0xc000, scoped, tag = 'input window, operand 3, single buffered']
    #allocation9 [shape = 's32[1]{0}', space=sflag, size = 0x4, scoped, tag = 'scoped memory for tpu_custom_call.1']
    #allocation10 [shape = 'u8[294912]{0}', space=vmem, size = 0x48000, scoped, tag = 'input window, operand 5, single buffered']
    #allocation11 [shape = 'u8[294912]{0}', space=vmem, size = 0x48000, scoped, tag = 'input window, operand 7, single buffered']
    #allocation12 [shape = 's32[1]{0}', space=sflag, size = 0x4, scoped, tag = 'scoped memory for tpu_custom_call.1']
    #allocation13 [shape = 'u8[294912]{0}', space=vmem, size = 0x48000, scoped, tag = 'input window, operand 9, single buffered']
    #allocation14 [shape = 'u8[98304]{0}', space=vmem, size = 0x18000, scoped, tag = 'input window, operand 11, single buffered']
    #allocation15 [shape = 's32[1]{0}', space=sflag, size = 0x4, scoped, tag = 'scoped memory for tpu_custom_call.1']
    #allocation16 [shape = 'u8[4096]{0}', space=vmem, size = 0x1000, scoped, tag = 'output window, operand 0, single buffered']
    %18 = vsyncpa [#allocation3], 0
    %19 = vsyncpa [#allocation6], 0
    %20 = vsyncpa [#allocation9], 0
    %21 = vsyncpa [#allocation12], 0
    %22 = vsyncpa [#allocation15], 0
    %23 = vsyncpa [#allocation4], 0
    // Predicated region
    $region2: #{tpu_custom_call.1} parent=1 // pred_check
      _
    $region3: #{tpu_custom_call.1} parent=1 // pred_check_branch
      %25 = sbr.rel (0) target = $region5
    $region4: #{tpu_custom_call.1} parent=1 // pred_region
      %s27 = ssub.s32 128, 128
      %28 = vsyncadd [#allocation3], %s27
      %s30 = sshll.u32 [#allocation2], 4
      %s31 = int_to_ptr.vmem [resolvable:$true] %s30
      %33 = dma.hbm_to_vmem [thread:$0]  %s0, 128, %s31, [#allocation3]
    $region5: #{tpu_custom_call.1} parent=1 // pred_fallthru
      _
    // Predicated region
    $region6: #{tpu_custom_call.1} parent=1 // pred_check
      _
    $region7: #{tpu_custom_call.1} parent=1 // pred_check_branch
      %35 = sbr.rel (0) target = $region9
    $region8: #{tpu_custom_call.1} parent=1 // pred_region
      %s37 = ssub.s32 16, 16
      %38 = vsyncadd [#allocation6], %s37
      %s40 = sshll.u32 [#allocation5], 4
      %s41 = int_to_ptr.vmem [resolvable:$true] %s40
      %43 = dma.hbm_to_vmem [thread:$0]  %s1, 16, %s41, [#allocation6]
    $region9: #{tpu_custom_call.1} parent=1 // pred_fallthru
      _
    // Predicated region
    $region10: #{tpu_custom_call.1} parent=1 // pred_check
      _
    $region11: #{tpu_custom_call.1} parent=1 // pred_check_branch
      %45 = sbr.rel (0) target = $region13
    $region12: #{tpu_custom_call.1} parent=1 // pred_region
      %s47 = ssub.s32 16, 16
      %48 = vsyncadd [#allocation6], %s47
      %s50 = sshll.u32 [#allocation7], 4
      %s51 = int_to_ptr.vmem [resolvable:$true] %s50
      %53 = dma.hbm_to_vmem [thread:$0]  %s2, 16, %s51, [#allocation6]
    $region13: #{tpu_custom_call.1} parent=1 // pred_fallthru
      _
    // Predicated region
    $region14: #{tpu_custom_call.1} parent=1 // pred_check
      _
    $region15: #{tpu_custom_call.1} parent=1 // pred_check_branch
      %55 = sbr.rel (0) target = $region17
    $region16: #{tpu_custom_call.1} parent=1 // pred_region
      %s57 = ssub.s32 1536, 1536
      %58 = vsyncadd [#allocation9], %s57
      %s59 = sshll.u32 [#allocation8], 4
      %s60 = int_to_ptr.vmem [resolvable:$true] %s59
      %65 = dma.hbm_to_vmem [thread:$0]  %s3, 1536, %s60, [#allocation9], 192, 192, 12
    $region17: #{tpu_custom_call.1} parent=1 // pred_fallthru
      _
    // Predicated region
    $region18: #{tpu_custom_call.1} parent=1 // pred_check
      _
    $region19: #{tpu_custom_call.1} parent=1 // pred_check_branch
      %67 = sbr.rel (0) target = $region21
    $region20: #{tpu_custom_call.1} parent=1 // pred_region
      _
    $region21: #{tpu_custom_call.1} parent=1 // pred_fallthru
      _
    // Predicated region
    $region22: #{tpu_custom_call.1} parent=1 // pred_check
      _
    $region23: #{tpu_custom_call.1} parent=1 // pred_check_branch
      %69 = sbr.rel (0) target = $region25
    $region24: #{tpu_custom_call.1} parent=1 // pred_region
      %s71 = ssub.s32 9216, 9216
      %72 = vsyncadd [#allocation9], %s71
      %s73 = sshll.u32 [#allocation10], 4
      %s74 = int_to_ptr.vmem [resolvable:$true] %s73
      %79 = dma.hbm_to_vmem [thread:$0]  %s5, 9216, %s74, [#allocation9], 192, 192, 12
    $region25: #{tpu_custom_call.1} parent=1 // pred_fallthru
      _
    // Predicated region
    $region26: #{tpu_custom_call.1} parent=1 // pred_check
      _
    $region27: #{tpu_custom_call.1} parent=1 // pred_check_branch
      %81 = sbr.rel (0) target = $region29
    $region28: #{tpu_custom_call.1} parent=1 // pred_region
      _
    $region29: #{tpu_custom_call.1} parent=1 // pred_fallthru
      _
    // Predicated region
    $region30: #{tpu_custom_call.1} parent=1 // pred_check
      _
    $region31: #{tpu_custom_call.1} parent=1 // pred_check_branch
      %83 = sbr.rel (0) target = $region33
    $region32: #{tpu_custom_call.1} parent=1 // pred_region
      %s85 = ssub.s32 9216, 9216
      %86 = vsyncadd [#allocation12], %s85
      %s87 = sshll.u32 [#allocation11], 4
      %s88 = int_to_ptr.vmem [resolvable:$true] %s87
      %93 = dma.hbm_to_vmem [thread:$0]  %s7, 9216, %s88, [#allocation12], 192, 192, 12
    $region33: #{tpu_custom_call.1} parent=1 // pred_fallthru
      _
    // Predicated region
    $region34: #{tpu_custom_call.1} parent=1 // pred_check
      _
    $region35: #{tpu_custom_call.1} parent=1 // pred_check_branch
      %95 = sbr.rel (0) target = $region37
    $region36: #{tpu_custom_call.1} parent=1 // pred_region
      _
    $region37: #{tpu_custom_call.1} parent=1 // pred_fallthru
      _
    // Predicated region
    $region38: #{tpu_custom_call.1} parent=1 // pred_check
      _
    $region39: #{tpu_custom_call.1} parent=1 // pred_check_branch
      %97 = sbr.rel (0) target = $region41
    $region40: #{tpu_custom_call.1} parent=1 // pred_region
      %s99 = ssub.s32 9216, 9216
      %100 = vsyncadd [#allocation12], %s99
      %s101 = sshll.u32 [#allocation13], 4
      %s102 = int_to_ptr.vmem [resolvable:$true] %s101
      %107 = dma.hbm_to_vmem [thread:$0]  %s9, 9216, %s102, [#allocation12], 192, 192, 12
    $region41: #{tpu_custom_call.1} parent=1 // pred_fallthru
      _
    // Predicated region
    $region42: #{tpu_custom_call.1} parent=1 // pred_check
      _
    $region43: #{tpu_custom_call.1} parent=1 // pred_check_branch
      %109 = sbr.rel (0) target = $region45
    $region44: #{tpu_custom_call.1} parent=1 // pred_region
      _
    $region45: #{tpu_custom_call.1} parent=1 // pred_fallthru
      _
    // Predicated region
    $region46: #{tpu_custom_call.1} parent=1 // pred_check
      _
    $region47: #{tpu_custom_call.1} parent=1 // pred_check_branch
      %111 = sbr.rel (0) target = $region49
    $region48: #{tpu_custom_call.1} parent=1 // pred_region
      %s113 = ssub.s32 3072, 3072
      %114 = vsyncadd [#allocation15], %s113
      %s115 = sshll.u32 [#allocation14], 4
      %s116 = int_to_ptr.vmem [resolvable:$true] %s115
      %121 = dma.hbm_to_vmem [thread:$0]  %s11, 3072, %s116, [#allocation15], 64, 64, 4
    $region49: #{tpu_custom_call.1} parent=1 // pred_fallthru
      _
    // Predicated region
    $region50: #{tpu_custom_call.1} parent=1 // pred_check
      _
    $region51: #{tpu_custom_call.1} parent=1 // pred_check_branch
      %123 = sbr.rel (0) target = $region53
    $region52: #{tpu_custom_call.1} parent=1 // pred_region
      _
    $region53: #{tpu_custom_call.1} parent=1 // pred_fallthru
      _
    // Predicated region
    $region54: #{tpu_custom_call.1} parent=1 // pred_check
      _
    $region55: #{tpu_custom_call.1} parent=1 // pred_check_branch
      %125 = sbr.rel (0) target = $region57
    $region56: #{tpu_custom_call.1} parent=1 // pred_region
      %126 = dma.done [#allocation3], 128
    $region57: #{tpu_custom_call.1} parent=1 // pred_fallthru
      _
    // Predicated region
    $region58: #{tpu_custom_call.1} parent=1 // pred_check
      _
    $region59: #{tpu_custom_call.1} parent=1 // pred_check_branch
      %128 = sbr.rel (0) target = $region61
    $region60: #{tpu_custom_call.1} parent=1 // pred_region
      %129 = dma.done [#allocation6], 16
    $region61: #{tpu_custom_call.1} parent=1 // pred_fallthru
      _
    // Predicated region
    $region62: #{tpu_custom_call.1} parent=1 // pred_check
      _
    $region63: #{tpu_custom_call.1} parent=1 // pred_check_branch
      %131 = sbr.rel (0) target = $region65
    $region64: #{tpu_custom_call.1} parent=1 // pred_region
      %132 = dma.done [#allocation6], 16
    $region65: #{tpu_custom_call.1} parent=1 // pred_fallthru
      _
    // Predicated region
    $region66: #{tpu_custom_call.1} parent=1 // pred_check
      _
    $region67: #{tpu_custom_call.1} parent=1 // pred_check_branch
      %134 = sbr.rel (0) target = $region69
    $region68: #{tpu_custom_call.1} parent=1 // pred_region
      %135 = dma.done [#allocation9], 1536
    $region69: #{tpu_custom_call.1} parent=1 // pred_fallthru
      _
    // Predicated region
    $region70: #{tpu_custom_call.1} parent=1 // pred_check
      _
    $region71: #{tpu_custom_call.1} parent=1 // pred_check_branch
      %137 = sbr.rel (0) target = $region73
    $region72: #{tpu_custom_call.1} parent=1 // pred_region
      %138 = dma.done [#allocation9], 9216
    $region73: #{tpu_custom_call.1} parent=1 // pred_fallthru
      _
    // Predicated region
    $region74: #{tpu_custom_call.1} parent=1 // pred_check
      _
    $region75: #{tpu_custom_call.1} parent=1 // pred_check_branch
      %140 = sbr.rel (0) target = $region77
    $region76: #{tpu_custom_call.1} parent=1 // pred_region
      %141 = dma.done [#allocation12], 9216
    $region77: #{tpu_custom_call.1} parent=1 // pred_fallthru
      _
    // Predicated region
    $region78: #{tpu_custom_call.1} parent=1 // pred_check
      _
    $region79: #{tpu_custom_call.1} parent=1 // pred_check_branch
      %143 = sbr.rel (0) target = $region81
    $region80: #{tpu_custom_call.1} parent=1 // pred_region
      %144 = dma.done [#allocation12], 9216
    $region81: #{tpu_custom_call.1} parent=1 // pred_fallthru
      _
    // Predicated region
    $region82: #{tpu_custom_call.1} parent=1 // pred_check
      _
    $region83: #{tpu_custom_call.1} parent=1 // pred_check_branch
      %146 = sbr.rel (0) target = $region85
    $region84: #{tpu_custom_call.1} parent=1 // pred_region
      %147 = dma.done [#allocation15], 3072
    $region85: #{tpu_custom_call.1} parent=1 // pred_fallthru
      _
    %v149 = vld [vmem:[#allocation2] sm:$0xff]
    %v150 = vld [vmem:[#allocation5] sm:$0x1]
    %v152 = vlaneseq
    %v153 = vshrl.u32 %v152, 7
    %v154 = vsub.s32 0, %v153
    %v155 = vrot.slane %v150, %v154
    %v157 = vsub.f32 %v149, %v155
    %v158 = vld [vmem:[#allocation7] sm:$0x1]
    %v160 = vlaneseq
    %v161 = vshrl.u32 %v160, 7
    %v162 = vsub.s32 0, %v161
    %v163 = vrot.slane %v158, %v162
    %v165 = vmul.f32 %v157, %v163
    %v166 = vpack.c.bf16 %v165, %v165
    %v167 = vld [vmem:[#allocation8] sm:$0xff]
    %v168 = vld [vmem:[#allocation8 + $0x8] sm:$0xf]
    %v169 = vld [vmem:[#allocation8 + $0xc] sm:$0xff]
    %v170 = vld [vmem:[#allocation8 + $0x14] sm:$0xf]
    %v171 = vld [vmem:[#allocation8 + $0x18] sm:$0xff]
    %v172 = vld [vmem:[#allocation8 + $0x20] sm:$0xf]
    %v173 = vld [vmem:[#allocation8 + $0x24] sm:$0xff]
    %v174 = vld [vmem:[#allocation8 + $0x2c] sm:$0xf]
    %v175 = vld [vmem:[#allocation8 + $0x30] sm:$0xff]
    %v176 = vld [vmem:[#allocation8 + $0x38] sm:$0xf]
    %v177 = vld [vmem:[#allocation8 + $0x3c] sm:$0xff]
    %v178 = vld [vmem:[#allocation8 + $0x44] sm:$0xf]
    %v179 = vld [vmem:[#allocation8 + $0x48] sm:$0xff]
    %v180 = vld [vmem:[#allocation8 + $0x50] sm:$0xf]
    %v181 = vld [vmem:[#allocation8 + $0x54] sm:$0xff]
    %v182 = vld [vmem:[#allocation8 + $0x5c] sm:$0xf]
    %v183 = vld [vmem:[%s4] sm:$0x7]
    %v185 = vlaneseq
    %v186 = vshrl.u32 %v185, 7
    %v187 = vsub.s32 0, %v186
    %v188 = vrot.slane %v183, %v187
    %v189 = vlaneseq
    %v190 = vshrl.u32 %v189, 7
    %v191 = vsub.s32 1, %v190
    %v192 = vrot.slane %v183, %v191
    %v193 = vlaneseq
    %v194 = vshrl.u32 %v193, 7
    %v195 = vsub.s32 2, %v194
    %v196 = vrot.slane %v183, %v195
    %v216 = vunpack.c.l.b16 %v167
    %v217 = vunpack.c.h.b16 %v167
    %v218 = vunpack.c.l.b16 %v168
    %v219 = vunpack.c.l.b16 %v169
    %v220 = vunpack.c.h.b16 %v169
    %v221 = vunpack.c.l.b16 %v170
    %v222 = vunpack.c.l.b16 %v171
    %v223 = vunpack.c.h.b16 %v171
    %v224 = vunpack.c.l.b16 %v172
    %v225 = vunpack.c.l.b16 %v173
    %v226 = vunpack.c.h.b16 %v173
    %v227 = vunpack.c.l.b16 %v174
    %v228 = vunpack.c.l.b16 %v175
    %v229 = vunpack.c.h.b16 %v175
    %v230 = vunpack.c.l.b16 %v176
    %v231 = vunpack.c.l.b16 %v177
    %v232 = vunpack.c.h.b16 %v177
    %v233 = vunpack.c.l.b16 %v178
    %v234 = vunpack.c.l.b16 %v179
    %v235 = vunpack.c.h.b16 %v179
    %v236 = vunpack.c.l.b16 %v180
    %v237 = vunpack.c.l.b16 %v181
    %v238 = vunpack.c.h.b16 %v181
    %v239 = vunpack.c.l.b16 %v182
    %v240 = vpack.c.b16 %v219, %v216
    %v241 = vpack.c.b16 %v220, %v217
    %v242 = vpack.c.b16 %v221, %v218
    %v243 = vpack.c.b16 %v225, %v222
    %v244 = vpack.c.b16 %v226, %v223
    %v245 = vpack.c.b16 %v227, %v224
    %v246 = vpack.c.b16 %v231, %v228
    %v247 = vpack.c.b16 %v232, %v229
    %v248 = vpack.c.b16 %v233, %v230
    %v249 = vpack.c.b16 %v237, %v234
    %v250 = vpack.c.b16 %v238, %v235
    %v251 = vpack.c.b16 %v239, %v236
    %vm264 = vcmask 523264
    %v266 = vsel %vm264, %v166, 0
    %268 = vmatprep.subr.bf16.mxu0 0
    %269 = vmatpush1.bf16.msra.mxu0 0
    %270 = vmatprep.subr.bf16.mxu0 0
    %271 = vmatpush1.bf16.msra.mxu0 0
    %272 = vmatprep.subr.bf16.mxu0 0
    %273 = vmatpush1.bf16.msra.mxu0 0
    %274 = vmatprep.subr.bf16.mxu0 0
    %275 = vmatpush1.bf16.msra.mxu0 0
    %276 = vmatprep.subr.bf16.mxu0 %v250
    %277 = vmatpush1.bf16.msra.mxu0 %v249
    %278 = vmatprep.subr.bf16.mxu0 %v247
    %279 = vmatpush1.bf16.msra.mxu0 %v246
    %280 = vmatprep.subr.bf16.mxu0 %v244
    %281 = vmatpush1.bf16.msra.mxu0 %v243
    %282 = vmatprep.subr.bf16.mxu0 %v241
    %283 = vmatpush1.bf16.msra.mxu0 %v240
    %284 = vmatprep.subr.bf16.mxu0 0
    %285 = vmatpush2.bf16.msra.mxu0 0
    %286 = vmatprep.subr.bf16.mxu0 0
    %287 = vmatpush2.bf16.msra.mxu0 0
    %288 = vmatprep.subr.bf16.mxu0 0
    %289 = vmatpush2.bf16.msra.mxu0 0
    %290 = vmatprep.subr.bf16.mxu0 0
    %291 = vmatpush2.bf16.msra.mxu0 0
    %292 = vmatprep.subr.bf16.mxu0 0
    %293 = vmatpush2.bf16.msra.mxu0 0
    %294 = vmatprep.subr.bf16.mxu0 0
    %295 = vmatpush2.bf16.msra.mxu0 0
    %296 = vmatprep.subr.bf16.mxu0 0
    %297 = vmatpush2.bf16.msra.mxu0 0
    %298 = vmatprep.subr.bf16.mxu0 0
    %299 = vmatpush2.bf16.msra.mxu0 0
    %300 = vmatprep.mubr.bf16.mxu0 0
    %301 = vmatmul.mubr.bf16.gmra.mxu0 %v266
    %v302 = vpop.f32.mrf.mxu0
    %v303 = vadd.f32 %v188, %v302
    %v304 = vpop.f32.mrf.mxu0
    %v305 = vadd.f32 %v192, %v304
    %v306 = vpop.f32.mrf.mxu0
    %v307 = vpop.f32.mrf.mxu0
    %308 = vdwg.mxu0
    %309 = vmatprep.subr.bf16.mxu0 0
    %310 = vmatpush1.bf16.msra.mxu0 0
    %311 = vmatprep.subr.bf16.mxu0 0
    %312 = vmatpush1.bf16.msra.mxu0 0
    %313 = vmatprep.subr.bf16.mxu0 0
    %314 = vmatpush1.bf16.msra.mxu0 0
    %315 = vmatprep.subr.bf16.mxu0 0
    %316 = vmatpush1.bf16.msra.mxu0 0
    %317 = vmatprep.subr.bf16.mxu0 0
    %318 = vmatpush1.bf16.msra.mxu0 %v251
    %319 = vmatprep.subr.bf16.mxu0 0
    %320 = vmatpush1.bf16.msra.mxu0 %v248
    %321 = vmatprep.subr.bf16.mxu0 0
    %322 = vmatpush1.bf16.msra.mxu0 %v245
    %323 = vmatprep.subr.bf16.mxu0 0
    %324 = vmatpush1.bf16.msra.mxu0 %v242
    %325 = vmatprep.subr.bf16.mxu0 0
    %326 = vmatpush2.bf16.msra.mxu0 0
    %327 = vmatprep.subr.bf16.mxu0 0
    %328 = vmatpush2.bf16.msra.mxu0 0
    %329 = vmatprep.subr.bf16.mxu0 0
    %330 = vmatpush2.bf16.msra.mxu0 0
    %331 = vmatprep.subr.bf16.mxu0 0
    %332 = vmatpush2.bf16.msra.mxu0 0
    %333 = vmatprep.subr.bf16.mxu0 0
    %334 = vmatpush2.bf16.msra.mxu0 0
    %335 = vmatprep.subr.bf16.mxu0 0
    %336 = vmatpush2.bf16.msra.mxu0 0
    %337 = vmatprep.subr.bf16.mxu0 0
    %338 = vmatpush2.bf16.msra.mxu0 0
    %339 = vmatprep.subr.bf16.mxu0 0
    %340 = vmatpush2.bf16.msra.mxu0 0
    %341 = vmatprep.mubr.bf16.mxu0 0
    %342 = vmatmul.mubr.bf16.gmra.mxu0 %v266
    %v343 = vpop.f32.mrf.mxu0
    %v344 = vadd.f32 %v196, %v343
    %v345 = vpop.f32.mrf.mxu0
    %v346 = vpop.f32.mrf.mxu0
    %v347 = vpop.f32.mrf.mxu0
    %348 = vdwg.mxu0
    %v349 = vmax.f32 %v303, 0.0
    %v350 = vmax.f32 %v305, 0.0
    %v351 = vmax.f32 %v344, 0.0
    %v352 = vpack.c.bf16 %v349, %v349
    %v353 = vpack.c.bf16 %v350, %v350
    %v354 = vpack.c.bf16 %v351, %v351
    %v355 = vld [vmem:[#allocation10] sm:$0xff]
    %v356 = vld [vmem:[#allocation10 + $0x8] sm:$0xf]
    %v357 = vld [vmem:[#allocation10 + $0xc] sm:$0xff]
    %v358 = vld [vmem:[#allocation10 + $0x14] sm:$0xf]
    %v359 = vld [vmem:[#allocation10 + $0x18] sm:$0xff]
    %v360 = vld [vmem:[#allocation10 + $0x20] sm:$0xf]
    %v361 = vld [vmem:[#allocation10 + $0x24] sm:$0xff]
    %v362 = vld [vmem:[#allocation10 + $0x2c] sm:$0xf]
    %v363 = vld [vmem:[#allocation10 + $0x30] sm:$0xff]
    %v364 = vld [vmem:[#allocation10 + $0x38] sm:$0xf]
    %v365 = vld [vmem:[#allocation10 + $0x3c] sm:$0xff]
    %v366 = vld [vmem:[#allocation10 + $0x44] sm:$0xf]
    %v367 = vld [vmem:[#allocation10 + $0x48] sm:$0xff]
    %v368 = vld [vmem:[#allocation10 + $0x50] sm:$0xf]
    %v369 = vld [vmem:[#allocation10 + $0x54] sm:$0xff]
    %v370 = vld [vmem:[#allocation10 + $0x5c] sm:$0xf]
    %v371 = vld [vmem:[#allocation10 + $0x60] sm:$0xff]
    %v372 = vld [vmem:[#allocation10 + $0x68] sm:$0xf]
    %v373 = vld [vmem:[#allocation10 + $0x6c] sm:$0xff]
    %v374 = vld [vmem:[#allocation10 + $0x74] sm:$0xf]
    %v375 = vld [vmem:[#allocation10 + $0x78] sm:$0xff]
    %v376 = vld [vmem:[#allocation10 + $0x80] sm:$0xf]
    %v377 = vld [vmem:[#allocation10 + $0x84] sm:$0xff]
    %v378 = vld [vmem:[#allocation10 + $0x8c] sm:$0xf]
    %v379 = vld [vmem:[#allocation10 + $0x90] sm:$0xff]
    %v380 = vld [vmem:[#allocation10 + $0x98] sm:$0xf]
    %v381 = vld [vmem:[#allocation10 + $0x9c] sm:$0xff]
    %v382 = vld [vmem:[#allocation10 + $0xa4] sm:$0xf]
    %v383 = vld [vmem:[#allocation10 + $0xa8] sm:$0xff]
    %v384 = vld [vmem:[#allocation10 + $0xb0] sm:$0xf]
    %v385 = vld [vmem:[#allocation10 + $0xb4] sm:$0xff]
    %v386 = vld [vmem:[#allocation10 + $0xbc] sm:$0xf]
    %v387 = vld [vmem:[#allocation10 + $0xc0] sm:$0xff]
    %v388 = vld [vmem:[#allocation10 + $0xc8] sm:$0xf]
    %v389 = vld [vmem:[#allocation10 + $0xcc] sm:$0xff]
    %v390 = vld [vmem:[#allocation10 + $0xd4] sm:$0xf]
    %v391 = vld [vmem:[#allocation10 + $0xd8] sm:$0xff]
    %v392 = vld [vmem:[#allocation10 + $0xe0] sm:$0xf]
    %v393 = vld [vmem:[#allocation10 + $0xe4] sm:$0xff]
    %v394 = vld [vmem:[#allocation10 + $0xec] sm:$0xf]
    %v395 = vld [vmem:[#allocation10 + $0xf0] sm:$0xff]
    %v396 = vld [vmem:[#allocation10 + $0xf8] sm:$0xf]
    %v397 = vld [vmem:[#allocation10 + $0xfc] sm:$0xff]
    %v398 = vld [vmem:[#allocation10 + $0x104] sm:$0xf]
    %v399 = vld [vmem:[#allocation10 + $0x108] sm:$0xff]
    %v400 = vld [vmem:[#allocation10 + $0x110] sm:$0xf]
    %v401 = vld [vmem:[#allocation10 + $0x114] sm:$0xff]
    %v402 = vld [vmem:[#allocation10 + $0x11c] sm:$0xf]
    %v403 = vld [vmem:[#allocation10 + $0x120] sm:$0xff]
    %v404 = vld [vmem:[#allocation10 + $0x128] sm:$0xf]
    %v405 = vld [vmem:[#allocation10 + $0x12c] sm:$0xff]
    %v406 = vld [vmem:[#allocation10 + $0x134] sm:$0xf]
    %v407 = vld [vmem:[#allocation10 + $0x138] sm:$0xff]
    %v408 = vld [vmem:[#allocation10 + $0x140] sm:$0xf]
    %v409 = vld [vmem:[#allocation10 + $0x144] sm:$0xff]
    %v410 = vld [vmem:[#allocation10 + $0x14c] sm:$0xf]
    %v411 = vld [vmem:[#allocation10 + $0x150] sm:$0xff]
    %v412 = vld [vmem:[#allocation10 + $0x158] sm:$0xf]
    %v413 = vld [vmem:[#allocation10 + $0x15c] sm:$0xff]
    %v414 = vld [vmem:[#allocation10 + $0x164] sm:$0xf]
    %v415 = vld [vmem:[#allocation10 + $0x168] sm:$0xff]
    %v416 = vld [vmem:[#allocation10 + $0x170] sm:$0xf]
    %v417 = vld [vmem:[#allocation10 + $0x174] sm:$0xff]
    %v418 = vld [vmem:[#allocation10 + $0x17c] sm:$0xf]
    %v419 = vld [vmem:[#allocation10 + $0x180] sm:$0xff]
    %v420 = vld [vmem:[#allocation10 + $0x188] sm:$0xf]
    %v421 = vld [vmem:[#allocation10 + $0x18c] sm:$0xff]
    %v422 = vld [vmem:[#allocation10 + $0x194] sm:$0xf]
    %v423 = vld [vmem:[#allocation10 + $0x198] sm:$0xff]
    %v424 = vld [vmem:[#allocation10 + $0x1a0] sm:$0xf]
    %v425 = vld [vmem:[#allocation10 + $0x1a4] sm:$0xff]
    %v426 = vld [vmem:[#allocation10 + $0x1ac] sm:$0xf]
    %v427 = vld [vmem:[#allocation10 + $0x1b0] sm:$0xff]
    %v428 = vld [vmem:[#allocation10 + $0x1b8] sm:$0xf]
    %v429 = vld [vmem:[#allocation10 + $0x1bc] sm:$0xff]
    %v430 = vld [vmem:[#allocation10 + $0x1c4] sm:$0xf]
    %v431 = vld [vmem:[#allocation10 + $0x1c8] sm:$0xff]
    %v432 = vld [vmem:[#allocation10 + $0x1d0] sm:$0xf]
    %v433 = vld [vmem:[#allocation10 + $0x1d4] sm:$0xff]
    %v434 = vld [vmem:[#allocation10 + $0x1dc] sm:$0xf]
    %v435 = vld [vmem:[#allocation10 + $0x1e0] sm:$0xff]
    %v436 = vld [vmem:[#allocation10 + $0x1e8] sm:$0xf]
    %v437 = vld [vmem:[#allocation10 + $0x1ec] sm:$0xff]
    %v438 = vld [vmem:[#allocation10 + $0x1f4] sm:$0xf]
    %v439 = vld [vmem:[#allocation10 + $0x1f8] sm:$0xff]
    %v440 = vld [vmem:[#allocation10 + $0x200] sm:$0xf]
    %v441 = vld [vmem:[#allocation10 + $0x204] sm:$0xff]
    %v442 = vld [vmem:[#allocation10 + $0x20c] sm:$0xf]
    %v443 = vld [vmem:[#allocation10 + $0x210] sm:$0xff]
    %v444 = vld [vmem:[#allocation10 + $0x218] sm:$0xf]
    %v445 = vld [vmem:[#allocation10 + $0x21c] sm:$0xff]
    %v446 = vld [vmem:[#allocation10 + $0x224] sm:$0xf]
    %v447 = vld [vmem:[#allocation10 + $0x228] sm:$0xff]
    %v448 = vld [vmem:[#allocation10 + $0x230] sm:$0xf]
    %v449 = vld [vmem:[#allocation10 + $0x234] sm:$0xff]
    %v450 = vld [vmem:[#allocation10 + $0x23c] sm:$0xf]
    %v451 = vld [vmem:[%s6] sm:$0x7]
    %v453 = vlaneseq
    %v454 = vshrl.u32 %v453, 7
    %v455 = vsub.s32 0, %v454
    %v456 = vrot.slane %v451, %v455
    %v457 = vlaneseq
    %v458 = vshrl.u32 %v457, 7
    %v459 = vsub.s32 1, %v458
    %v460 = vrot.slane %v451, %v459
    %v461 = vlaneseq
    %v462 = vshrl.u32 %v461, 7
    %v463 = vsub.s32 2, %v462
    %v464 = vrot.slane %v451, %v463
    %v564 = vunpack.c.l.b16 %v355
    %v565 = vunpack.c.h.b16 %v355
    %v566 = vunpack.c.l.b16 %v356
    %v567 = vunpack.c.l.b16 %v357
    %v568 = vunpack.c.h.b16 %v357
    %v569 = vunpack.c.l.b16 %v358
    %v570 = vunpack.c.l.b16 %v359
    %v571 = vunpack.c.h.b16 %v359
    %v572 = vunpack.c.l.b16 %v360
    %v573 = vunpack.c.l.b16 %v361
    %v574 = vunpack.c.h.b16 %v361
    %v575 = vunpack.c.l.b16 %v362
    %v576 = vunpack.c.l.b16 %v363
    %v577 = vunpack.c.h.b16 %v363
    %v578 = vunpack.c.l.b16 %v364
    %v579 = vunpack.c.l.b16 %v365
    %v580 = vunpack.c.h.b16 %v365
    %v581 = vunpack.c.l.b16 %v366
    %v582 = vunpack.c.l.b16 %v367
    %v583 = vunpack.c.h.b16 %v367
    %v584 = vunpack.c.l.b16 %v368
    %v585 = vunpack.c.l.b16 %v369
    %v586 = vunpack.c.h.b16 %v369
    %v587 = vunpack.c.l.b16 %v370
    %v588 = vunpack.c.l.b16 %v371
    %v589 = vunpack.c.h.b16 %v371
    %v590 = vunpack.c.l.b16 %v372
    %v591 = vunpack.c.l.b16 %v373
    %v592 = vunpack.c.h.b16 %v373
    %v593 = vunpack.c.l.b16 %v374
    %v594 = vunpack.c.l.b16 %v375
    %v595 = vunpack.c.h.b16 %v375
    %v596 = vunpack.c.l.b16 %v376
    %v597 = vunpack.c.l.b16 %v377
    %v598 = vunpack.c.h.b16 %v377
    %v599 = vunpack.c.l.b16 %v378
    %v600 = vunpack.c.l.b16 %v379
    %v601 = vunpack.c.h.b16 %v379
    %v602 = vunpack.c.l.b16 %v380
    %v603 = vunpack.c.l.b16 %v381
    %v604 = vunpack.c.h.b16 %v381
    %v605 = vunpack.c.l.b16 %v382
    %v606 = vunpack.c.l.b16 %v383
    %v607 = vunpack.c.h.b16 %v383
    %v608 = vunpack.c.l.b16 %v384
    %v609 = vunpack.c.l.b16 %v385
    %v610 = vunpack.c.h.b16 %v385
    %v611 = vunpack.c.l.b16 %v386
    %v612 = vunpack.c.l.b16 %v387
    %v613 = vunpack.c.h.b16 %v387
    %v614 = vunpack.c.l.b16 %v388
    %v615 = vunpack.c.l.b16 %v389
    %v616 = vunpack.c.h.b16 %v389
    %v617 = vunpack.c.l.b16 %v390
    %v618 = vunpack.c.l.b16 %v391
    %v619 = vunpack.c.h.b16 %v391
    %v620 = vunpack.c.l.b16 %v392
    %v621 = vunpack.c.l.b16 %v393
    %v622 = vunpack.c.h.b16 %v393
    %v623 = vunpack.c.l.b16 %v394
    %v624 = vunpack.c.l.b16 %v395
    %v625 = vunpack.c.h.b16 %v395
    %v626 = vunpack.c.l.b16 %v396
    %v627 = vunpack.c.l.b16 %v397
    %v628 = vunpack.c.h.b16 %v397
    %v629 = vunpack.c.l.b16 %v398
    %v630 = vunpack.c.l.b16 %v399
    %v631 = vunpack.c.h.b16 %v399
    %v632 = vunpack.c.l.b16 %v400
    %v633 = vunpack.c.l.b16 %v401
    %v634 = vunpack.c.h.b16 %v401
    %v635 = vunpack.c.l.b16 %v402
    %v636 = vunpack.c.l.b16 %v403
    %v637 = vunpack.c.h.b16 %v403
    %v638 = vunpack.c.l.b16 %v404
    %v639 = vunpack.c.l.b16 %v405
    %v640 = vunpack.c.h.b16 %v405
    %v641 = vunpack.c.l.b16 %v406
    %v642 = vunpack.c.l.b16 %v407
    %v643 = vunpack.c.h.b16 %v407
    %v644 = vunpack.c.l.b16 %v408
    %v645 = vunpack.c.l.b16 %v409
    %v646 = vunpack.c.h.b16 %v409
    %v647 = vunpack.c.l.b16 %v410
    %v648 = vunpack.c.l.b16 %v411
    %v649 = vunpack.c.h.b16 %v411
    %v650 = vunpack.c.l.b16 %v412
    %v651 = vunpack.c.l.b16 %v413
    %v652 = vunpack.c.h.b16 %v413
    %v653 = vunpack.c.l.b16 %v414
    %v654 = vunpack.c.l.b16 %v415
    %v655 = vunpack.c.h.b16 %v415
    %v656 = vunpack.c.l.b16 %v416
    %v657 = vunpack.c.l.b16 %v417
    %v658 = vunpack.c.h.b16 %v417
    %v659 = vunpack.c.l.b16 %v418
    %v660 = vunpack.c.l.b16 %v419
    %v661 = vunpack.c.h.b16 %v419
    %v662 = vunpack.c.l.b16 %v420
    %v663 = vunpack.c.l.b16 %v421
    %v664 = vunpack.c.h.b16 %v421
    %v665 = vunpack.c.l.b16 %v422
    %v666 = vunpack.c.l.b16 %v423
    %v667 = vunpack.c.h.b16 %v423
    %v668 = vunpack.c.l.b16 %v424
    %v669 = vunpack.c.l.b16 %v425
    %v670 = vunpack.c.h.b16 %v425
    %v671 = vunpack.c.l.b16 %v426
    %v672 = vunpack.c.l.b16 %v427
    %v673 = vunpack.c.h.b16 %v427
    %v674 = vunpack.c.l.b16 %v428
    %v675 = vunpack.c.l.b16 %v429
    %v676 = vunpack.c.h.b16 %v429
    %v677 = vunpack.c.l.b16 %v430
    %v678 = vunpack.c.l.b16 %v431
    %v679 = vunpack.c.h.b16 %v431
    %v680 = vunpack.c.l.b16 %v432
    %v681 = vunpack.c.l.b16 %v433
    %v682 = vunpack.c.h.b16 %v433
    %v683 = vunpack.c.l.b16 %v434
    %v684 = vunpack.c.l.b16 %v435
    %v685 = vunpack.c.h.b16 %v435
    %v686 = vunpack.c.l.b16 %v436
    %v687 = vunpack.c.l.b16 %v437
    %v688 = vunpack.c.h.b16 %v437
    %v689 = vunpack.c.l.b16 %v438
    %v690 = vunpack.c.l.b16 %v439
    %v691 = vunpack.c.h.b16 %v439
    %v692 = vunpack.c.l.b16 %v440
    %v693 = vunpack.c.l.b16 %v441
    %v694 = vunpack.c.h.b16 %v441
    %v695 = vunpack.c.l.b16 %v442
    %v696 = vunpack.c.l.b16 %v443
    %v697 = vunpack.c.h.b16 %v443
    %v698 = vunpack.c.l.b16 %v444
    %v699 = vunpack.c.l.b16 %v445
    %v700 = vunpack.c.h.b16 %v445
    %v701 = vunpack.c.l.b16 %v446
    %v702 = vunpack.c.l.b16 %v447
    %v703 = vunpack.c.h.b16 %v447
    %v704 = vunpack.c.l.b16 %v448
    %v705 = vunpack.c.l.b16 %v449
    %v706 = vunpack.c.h.b16 %v449
    %v707 = vunpack.c.l.b16 %v450
    %v708 = vpack.c.b16 %v567, %v564
    %v709 = vpack.c.b16 %v568, %v565
    %v710 = vpack.c.b16 %v569, %v566
    %v711 = vpack.c.b16 %v573, %v570
    %v712 = vpack.c.b16 %v574, %v571
    %v713 = vpack.c.b16 %v575, %v572
    %v714 = vpack.c.b16 %v579, %v576
    %v715 = vpack.c.b16 %v580, %v577
    %v716 = vpack.c.b16 %v581, %v578
    %v717 = vpack.c.b16 %v585, %v582
    %v718 = vpack.c.b16 %v586, %v583
    %v719 = vpack.c.b16 %v587, %v584
    %v720 = vpack.c.b16 %v591, %v588
    %v721 = vpack.c.b16 %v592, %v589
    %v722 = vpack.c.b16 %v593, %v590
    %v723 = vpack.c.b16 %v597, %v594
    %v724 = vpack.c.b16 %v598, %v595
    %v725 = vpack.c.b16 %v599, %v596
    %v726 = vpack.c.b16 %v603, %v600
    %v727 = vpack.c.b16 %v604, %v601
    %v728 = vpack.c.b16 %v605, %v602
    %v729 = vpack.c.b16 %v609, %v606
    %v730 = vpack.c.b16 %v610, %v607
    %v731 = vpack.c.b16 %v611, %v608
    %v732 = vpack.c.b16 %v615, %v612
    %v733 = vpack.c.b16 %v616, %v613
    %v734 = vpack.c.b16 %v617, %v614
    %v735 = vpack.c.b16 %v621, %v618
    %v736 = vpack.c.b16 %v622, %v619
    %v737 = vpack.c.b16 %v623, %v620
    %v738 = vpack.c.b16 %v627, %v624
    %v739 = vpack.c.b16 %v628, %v625
    %v740 = vpack.c.b16 %v629, %v626
    %v741 = vpack.c.b16 %v633, %v630
    %v742 = vpack.c.b16 %v634, %v631
    %v743 = vpack.c.b16 %v635, %v632
    %v744 = vpack.c.b16 %v639, %v636
    %v745 = vpack.c.b16 %v640, %v637
    %v746 = vpack.c.b16 %v641, %v638
    %v747 = vpack.c.b16 %v645, %v642
    %v748 = vpack.c.b16 %v646, %v643
    %v749 = vpack.c.b16 %v647, %v644
    %v750 = vpack.c.b16 %v651, %v648
    %v751 = vpack.c.b16 %v652, %v649
    %v752 = vpack.c.b16 %v653, %v650
    %v753 = vpack.c.b16 %v657, %v654
    %v754 = vpack.c.b16 %v658, %v655
    %v755 = vpack.c.b16 %v659, %v656
    %v756 = vpack.c.b16 %v663, %v660
    %v757 = vpack.c.b16 %v664, %v661
    %v758 = vpack.c.b16 %v665, %v662
    %v759 = vpack.c.b16 %v669, %v666
    %v760 = vpack.c.b16 %v670, %v667
    %v761 = vpack.c.b16 %v671, %v668
    %v762 = vpack.c.b16 %v675, %v672
    %v763 = vpack.c.b16 %v676, %v673
    %v764 = vpack.c.b16 %v677, %v674
    %v765 = vpack.c.b16 %v681, %v678
    %v766 = vpack.c.b16 %v682, %v679
    %v767 = vpack.c.b16 %v683, %v680
    %v768 = vpack.c.b16 %v687, %v684
    %v769 = vpack.c.b16 %v688, %v685
    %v770 = vpack.c.b16 %v689, %v686
    %v771 = vpack.c.b16 %v693, %v690
    %v772 = vpack.c.b16 %v694, %v691
    %v773 = vpack.c.b16 %v695, %v692
    %v774 = vpack.c.b16 %v699, %v696
    %v775 = vpack.c.b16 %v700, %v697
    %v776 = vpack.c.b16 %v701, %v698
    %v777 = vpack.c.b16 %v705, %v702
    %v778 = vpack.c.b16 %v706, %v703
    %v779 = vpack.c.b16 %v707, %v704
    %852 = vmatprep.subr.bf16.mxu0 %v730
    %853 = vmatpush1.bf16.msra.mxu0 %v729
    %854 = vmatprep.subr.bf16.mxu0 %v727
    %855 = vmatpush1.bf16.msra.mxu0 %v726
    %856 = vmatprep.subr.bf16.mxu0 %v724
    %857 = vmatpush1.bf16.msra.mxu0 %v723
    %858 = vmatprep.subr.bf16.mxu0 %v721
    %859 = vmatpush1.bf16.msra.mxu0 %v720
    %860 = vmatprep.subr.bf16.mxu0 %v718
    %861 = vmatpush1.bf16.msra.mxu0 %v717
    %862 = vmatprep.subr.bf16.mxu0 %v715
    %863 = vmatpush1.bf16.msra.mxu0 %v714
    %864 = vmatprep.subr.bf16.mxu0 %v712
    %865 = vmatpush1.bf16.msra.mxu0 %v711
    %866 = vmatprep.subr.bf16.mxu0 %v709
    %867 = vmatpush1.bf16.msra.mxu0 %v708
    %868 = vmatprep.subr.bf16.mxu0 %v754
    %869 = vmatpush2.bf16.msra.mxu0 %v753
    %870 = vmatprep.subr.bf16.mxu0 %v751
    %871 = vmatpush2.bf16.msra.mxu0 %v750
    %872 = vmatprep.subr.bf16.mxu0 %v748
    %873 = vmatpush2.bf16.msra.mxu0 %v747
    %874 = vmatprep.subr.bf16.mxu0 %v745
    %875 = vmatpush2.bf16.msra.mxu0 %v744
    %876 = vmatprep.subr.bf16.mxu0 %v742
    %877 = vmatpush2.bf16.msra.mxu0 %v741
    %878 = vmatprep.subr.bf16.mxu0 %v739
    %879 = vmatpush2.bf16.msra.mxu0 %v738
    %880 = vmatprep.subr.bf16.mxu0 %v736
    %881 = vmatpush2.bf16.msra.mxu0 %v735
    %882 = vmatprep.subr.bf16.mxu0 %v733
    %883 = vmatpush2.bf16.msra.mxu0 %v732
    %884 = vmatprep.mubr.bf16.mxu0 %v353
    %885 = vmatmul.mubr.bf16.gmra.mxu0 %v352
    %v886 = vpop.f32.mrf.mxu0
    %v887 = vadd.f32 %v456, %v886
    %v888 = vpop.f32.mrf.mxu0
    %v889 = vadd.f32 %v460, %v888
    %v890 = vpop.f32.mrf.mxu0
    %v891 = vpop.f32.mrf.mxu0
    %892 = vdwg.mxu0
    %893 = vmatprep.subr.bf16.mxu0 %v778
    %894 = vmatpush1.bf16.msra.mxu0 %v777
    %895 = vmatprep.subr.bf16.mxu0 %v775
    %896 = vmatpush1.bf16.msra.mxu0 %v774
    %897 = vmatprep.subr.bf16.mxu0 %v772
    %898 = vmatpush1.bf16.msra.mxu0 %v771
    %899 = vmatprep.subr.bf16.mxu0 %v769
    %900 = vmatpush1.bf16.msra.mxu0 %v768
    %901 = vmatprep.subr.bf16.mxu0 %v766
    %902 = vmatpush1.bf16.msra.mxu0 %v765
    %903 = vmatprep.subr.bf16.mxu0 %v763
    %904 = vmatpush1.bf16.msra.mxu0 %v762
    %905 = vmatprep.subr.bf16.mxu0 %v760
    %906 = vmatpush1.bf16.msra.mxu0 %v759
    %907 = vmatprep.subr.bf16.mxu0 %v757
    %908 = vmatpush1.bf16.msra.mxu0 %v756
    %909 = vmatprep.subr.bf16.mxu0 0
    %910 = vmatpush2.bf16.msra.mxu0 0
    %911 = vmatprep.subr.bf16.mxu0 0
    %912 = vmatpush2.bf16.msra.mxu0 0
    %913 = vmatprep.subr.bf16.mxu0 0
    %914 = vmatpush2.bf16.msra.mxu0 0
    %915 = vmatprep.subr.bf16.mxu0 0
    %916 = vmatpush2.bf16.msra.mxu0 0
    %917 = vmatprep.subr.bf16.mxu0 0
    %918 = vmatpush2.bf16.msra.mxu0 0
    %919 = vmatprep.subr.bf16.mxu0 0
    %920 = vmatpush2.bf16.msra.mxu0 0
    %921 = vmatprep.subr.bf16.mxu0 0
    %922 = vmatpush2.bf16.msra.mxu0 0
    %923 = vmatprep.subr.bf16.mxu0 0
    %924 = vmatpush2.bf16.msra.mxu0 0
    %925 = vmatprep.mubr.bf16.mxu0 0
    %926 = vmatmul.mubr.bf16.gmra.mxu0 %v354
    %v927 = vpop.f32.mrf.mxu0
    %v928 = vadd.f32 %v887, %v927
    %v929 = vpop.f32.mrf.mxu0
    %v930 = vadd.f32 %v889, %v929
    %v931 = vpop.f32.mrf.mxu0
    %v932 = vpop.f32.mrf.mxu0
    %933 = vdwg.mxu0
    %934 = vmatprep.subr.bf16.mxu0 0
    %935 = vmatpush1.bf16.msra.mxu0 %v731
    %936 = vmatprep.subr.bf16.mxu0 0
    %937 = vmatpush1.bf16.msra.mxu0 %v728
    %938 = vmatprep.subr.bf16.mxu0 0
    %939 = vmatpush1.bf16.msra.mxu0 %v725
    %940 = vmatprep.subr.bf16.mxu0 0
    %941 = vmatpush1.bf16.msra.mxu0 %v722
    %942 = vmatprep.subr.bf16.mxu0 0
    %943 = vmatpush1.bf16.msra.mxu0 %v719
    %944 = vmatprep.subr.bf16.mxu0 0
    %945 = vmatpush1.bf16.msra.mxu0 %v716
    %946 = vmatprep.subr.bf16.mxu0 0
    %947 = vmatpush1.bf16.msra.mxu0 %v713
    %948 = vmatprep.subr.bf16.mxu0 0
    %949 = vmatpush1.bf16.msra.mxu0 %v710
    %950 = vmatprep.subr.bf16.mxu0 0
    %951 = vmatpush2.bf16.msra.mxu0 %v755
    %952 = vmatprep.subr.bf16.mxu0 0
    %953 = vmatpush2.bf16.msra.mxu0 %v752
    %954 = vmatprep.subr.bf16.mxu0 0
    %955 = vmatpush2.bf16.msra.mxu0 %v749
    %956 = vmatprep.subr.bf16.mxu0 0
    %957 = vmatpush2.bf16.msra.mxu0 %v746
    %958 = vmatprep.subr.bf16.mxu0 0
    %959 = vmatpush2.bf16.msra.mxu0 %v743
    %960 = vmatprep.subr.bf16.mxu0 0
    %961 = vmatpush2.bf16.msra.mxu0 %v740
    %962 = vmatprep.subr.bf16.mxu0 0
    %963 = vmatpush2.bf16.msra.mxu0 %v737
    %964 = vmatprep.subr.bf16.mxu0 0
    %965 = vmatpush2.bf16.msra.mxu0 %v734
    %966 = vmatprep.mubr.bf16.mxu0 %v353
    %967 = vmatmul.mubr.bf16.gmra.mxu0 %v352
    %v968 = vpop.f32.mrf.mxu0
    %v969 = vadd.f32 %v464, %v968
    %v970 = vpop.f32.mrf.mxu0
    %v971 = vpop.f32.mrf.mxu0
    %v972 = vpop.f32.mrf.mxu0
    %973 = vdwg.mxu0
    %974 = vmatprep.subr.bf16.mxu0 0
    %975 = vmatpush1.bf16.msra.mxu0 %v779
    %976 = vmatprep.subr.bf16.mxu0 0
    %977 = vmatpush1.bf16.msra.mxu0 %v776
    %978 = vmatprep.subr.bf16.mxu0 0
    %979 = vmatpush1.bf16.msra.mxu0 %v773
    %980 = vmatprep.subr.bf16.mxu0 0
    %981 = vmatpush1.bf16.msra.mxu0 %v770
    %982 = vmatprep.subr.bf16.mxu0 0
    %983 = vmatpush1.bf16.msra.mxu0 %v767
    %984 = vmatprep.subr.bf16.mxu0 0
    %985 = vmatpush1.bf16.msra.mxu0 %v764
    %986 = vmatprep.subr.bf16.mxu0 0
    %987 = vmatpush1.bf16.msra.mxu0 %v761
    %988 = vmatprep.subr.bf16.mxu0 0
    %989 = vmatpush1.bf16.msra.mxu0 %v758
    %990 = vmatprep.subr.bf16.mxu0 0
    %991 = vmatpush2.bf16.msra.mxu0 0
    %992 = vmatprep.subr.bf16.mxu0 0
    %993 = vmatpush2.bf16.msra.mxu0 0
    %994 = vmatprep.subr.bf16.mxu0 0
    %995 = vmatpush2.bf16.msra.mxu0 0
    %996 = vmatprep.subr.bf16.mxu0 0
    %997 = vmatpush2.bf16.msra.mxu0 0
    %998 = vmatprep.subr.bf16.mxu0 0
    %999 = vmatpush2.bf16.msra.mxu0 0
    %1000 = vmatprep.subr.bf16.mxu0 0
    %1001 = vmatpush2.bf16.msra.mxu0 0
    %1002 = vmatprep.subr.bf16.mxu0 0
    %1003 = vmatpush2.bf16.msra.mxu0 0
    %1004 = vmatprep.subr.bf16.mxu0 0
    %1005 = vmatpush2.bf16.msra.mxu0 0
    %1006 = vmatprep.mubr.bf16.mxu0 0
    %1007 = vmatmul.mubr.bf16.gmra.mxu0 %v354
    %v1008 = vpop.f32.mrf.mxu0
    %v1009 = vadd.f32 %v969, %v1008
    %v1010 = vpop.f32.mrf.mxu0
    %v1011 = vpop.f32.mrf.mxu0
    %v1012 = vpop.f32.mrf.mxu0
    %1013 = vdwg.mxu0
    %v1014 = vmax.f32 %v928, 0.0
    %v1015 = vmax.f32 %v930, 0.0
    %v1016 = vmax.f32 %v1009, 0.0
    %v1017 = vpack.c.bf16 %v1014, %v1014
    %v1018 = vpack.c.bf16 %v1015, %v1015
    %v1019 = vpack.c.bf16 %v1016, %v1016
    %v1020 = vld [vmem:[#allocation11] sm:$0xff]
    %v1021 = vld [vmem:[#allocation11 + $0x8] sm:$0xf]
    %v1022 = vld [vmem:[#allocation11 + $0xc] sm:$0xff]
    %v1023 = vld [vmem:[#allocation11 + $0x14] sm:$0xf]
    %v1024 = vld [vmem:[#allocation11 + $0x18] sm:$0xff]
    %v1025 = vld [vmem:[#allocation11 + $0x20] sm:$0xf]
    %v1026 = vld [vmem:[#allocation11 + $0x24] sm:$0xff]
    %v1027 = vld [vmem:[#allocation11 + $0x2c] sm:$0xf]
    %v1028 = vld [vmem:[#allocation11 + $0x30] sm:$0xff]
    %v1029 = vld [vmem:[#allocation11 + $0x38] sm:$0xf]
    %v1030 = vld [vmem:[#allocation11 + $0x3c] sm:$0xff]
    %v1031 = vld [vmem:[#allocation11 + $0x44] sm:$0xf]
    %v1032 = vld [vmem:[#allocation11 + $0x48] sm:$0xff]
    %v1033 = vld [vmem:[#allocation11 + $0x50] sm:$0xf]
    %v1034 = vld [vmem:[#allocation11 + $0x54] sm:$0xff]
    %v1035 = vld [vmem:[#allocation11 + $0x5c] sm:$0xf]
    %v1036 = vld [vmem:[#allocation11 + $0x60] sm:$0xff]
    %v1037 = vld [vmem:[#allocation11 + $0x68] sm:$0xf]
    %v1038 = vld [vmem:[#allocation11 + $0x6c] sm:$0xff]
    %v1039 = vld [vmem:[#allocation11 + $0x74] sm:$0xf]
    %v1040 = vld [vmem:[#allocation11 + $0x78] sm:$0xff]
    %v1041 = vld [vmem:[#allocation11 + $0x80] sm:$0xf]
    %v1042 = vld [vmem:[#allocation11 + $0x84] sm:$0xff]
    %v1043 = vld [vmem:[#allocation11 + $0x8c] sm:$0xf]
    %v1044 = vld [vmem:[#allocation11 + $0x90] sm:$0xff]
    %v1045 = vld [vmem:[#allocation11 + $0x98] sm:$0xf]
    %v1046 = vld [vmem:[#allocation11 + $0x9c] sm:$0xff]
    %v1047 = vld [vmem:[#allocation11 + $0xa4] sm:$0xf]
    %v1048 = vld [vmem:[#allocation11 + $0xa8] sm:$0xff]
    %v1049 = vld [vmem:[#allocation11 + $0xb0] sm:$0xf]
    %v1050 = vld [vmem:[#allocation11 + $0xb4] sm:$0xff]
    %v1051 = vld [vmem:[#allocation11 + $0xbc] sm:$0xf]
    %v1052 = vld [vmem:[#allocation11 + $0xc0] sm:$0xff]
    %v1053 = vld [vmem:[#allocation11 + $0xc8] sm:$0xf]
    %v1054 = vld [vmem:[#allocation11 + $0xcc] sm:$0xff]
    %v1055 = vld [vmem:[#allocation11 + $0xd4] sm:$0xf]
    %v1056 = vld [vmem:[#allocation11 + $0xd8] sm:$0xff]
    %v1057 = vld [vmem:[#allocation11 + $0xe0] sm:$0xf]
    %v1058 = vld [vmem:[#allocation11 + $0xe4] sm:$0xff]
    %v1059 = vld [vmem:[#allocation11 + $0xec] sm:$0xf]
    %v1060 = vld [vmem:[#allocation11 + $0xf0] sm:$0xff]
    %v1061 = vld [vmem:[#allocation11 + $0xf8] sm:$0xf]
    %v1062 = vld [vmem:[#allocation11 + $0xfc] sm:$0xff]
    %v1063 = vld [vmem:[#allocation11 + $0x104] sm:$0xf]
    %v1064 = vld [vmem:[#allocation11 + $0x108] sm:$0xff]
    %v1065 = vld [vmem:[#allocation11 + $0x110] sm:$0xf]
    %v1066 = vld [vmem:[#allocation11 + $0x114] sm:$0xff]
    %v1067 = vld [vmem:[#allocation11 + $0x11c] sm:$0xf]
    %v1068 = vld [vmem:[#allocation11 + $0x120] sm:$0xff]
    %v1069 = vld [vmem:[#allocation11 + $0x128] sm:$0xf]
    %v1070 = vld [vmem:[#allocation11 + $0x12c] sm:$0xff]
    %v1071 = vld [vmem:[#allocation11 + $0x134] sm:$0xf]
    %v1072 = vld [vmem:[#allocation11 + $0x138] sm:$0xff]
    %v1073 = vld [vmem:[#allocation11 + $0x140] sm:$0xf]
    %v1074 = vld [vmem:[#allocation11 + $0x144] sm:$0xff]
    %v1075 = vld [vmem:[#allocation11 + $0x14c] sm:$0xf]
    %v1076 = vld [vmem:[#allocation11 + $0x150] sm:$0xff]
    %v1077 = vld [vmem:[#allocation11 + $0x158] sm:$0xf]
    %v1078 = vld [vmem:[#allocation11 + $0x15c] sm:$0xff]
    %v1079 = vld [vmem:[#allocation11 + $0x164] sm:$0xf]
    %v1080 = vld [vmem:[#allocation11 + $0x168] sm:$0xff]
    %v1081 = vld [vmem:[#allocation11 + $0x170] sm:$0xf]
    %v1082 = vld [vmem:[#allocation11 + $0x174] sm:$0xff]
    %v1083 = vld [vmem:[#allocation11 + $0x17c] sm:$0xf]
    %v1084 = vld [vmem:[#allocation11 + $0x180] sm:$0xff]
    %v1085 = vld [vmem:[#allocation11 + $0x188] sm:$0xf]
    %v1086 = vld [vmem:[#allocation11 + $0x18c] sm:$0xff]
    %v1087 = vld [vmem:[#allocation11 + $0x194] sm:$0xf]
    %v1088 = vld [vmem:[#allocation11 + $0x198] sm:$0xff]
    %v1089 = vld [vmem:[#allocation11 + $0x1a0] sm:$0xf]
    %v1090 = vld [vmem:[#allocation11 + $0x1a4] sm:$0xff]
    %v1091 = vld [vmem:[#allocation11 + $0x1ac] sm:$0xf]
    %v1092 = vld [vmem:[#allocation11 + $0x1b0] sm:$0xff]
    %v1093 = vld [vmem:[#allocation11 + $0x1b8] sm:$0xf]
    %v1094 = vld [vmem:[#allocation11 + $0x1bc] sm:$0xff]
    %v1095 = vld [vmem:[#allocation11 + $0x1c4] sm:$0xf]
    %v1096 = vld [vmem:[#allocation11 + $0x1c8] sm:$0xff]
    %v1097 = vld [vmem:[#allocation11 + $0x1d0] sm:$0xf]
    %v1098 = vld [vmem:[#allocation11 + $0x1d4] sm:$0xff]
    %v1099 = vld [vmem:[#allocation11 + $0x1dc] sm:$0xf]
    %v1100 = vld [vmem:[#allocation11 + $0x1e0] sm:$0xff]
    %v1101 = vld [vmem:[#allocation11 + $0x1e8] sm:$0xf]
    %v1102 = vld [vmem:[#allocation11 + $0x1ec] sm:$0xff]
    %v1103 = vld [vmem:[#allocation11 + $0x1f4] sm:$0xf]
    %v1104 = vld [vmem:[#allocation11 + $0x1f8] sm:$0xff]
    %v1105 = vld [vmem:[#allocation11 + $0x200] sm:$0xf]
    %v1106 = vld [vmem:[#allocation11 + $0x204] sm:$0xff]
    %v1107 = vld [vmem:[#allocation11 + $0x20c] sm:$0xf]
    %v1108 = vld [vmem:[#allocation11 + $0x210] sm:$0xff]
    %v1109 = vld [vmem:[#allocation11 + $0x218] sm:$0xf]
    %v1110 = vld [vmem:[#allocation11 + $0x21c] sm:$0xff]
    %v1111 = vld [vmem:[#allocation11 + $0x224] sm:$0xf]
    %v1112 = vld [vmem:[#allocation11 + $0x228] sm:$0xff]
    %v1113 = vld [vmem:[#allocation11 + $0x230] sm:$0xf]
    %v1114 = vld [vmem:[#allocation11 + $0x234] sm:$0xff]
    %v1115 = vld [vmem:[#allocation11 + $0x23c] sm:$0xf]
    %v1116 = vld [vmem:[%s8] sm:$0x7]
    %v1118 = vlaneseq
    %v1119 = vshrl.u32 %v1118, 7
    %v1120 = vsub.s32 0, %v1119
    %v1121 = vrot.slane %v1116, %v1120
    %v1122 = vlaneseq
    %v1123 = vshrl.u32 %v1122, 7
    %v1124 = vsub.s32 1, %v1123
    %v1125 = vrot.slane %v1116, %v1124
    %v1126 = vlaneseq
    %v1127 = vshrl.u32 %v1126, 7
    %v1128 = vsub.s32 2, %v1127
    %v1129 = vrot.slane %v1116, %v1128
    %v1229 = vunpack.c.l.b16 %v1020
    %v1230 = vunpack.c.h.b16 %v1020
    %v1231 = vunpack.c.l.b16 %v1021
    %v1232 = vunpack.c.l.b16 %v1022
    %v1233 = vunpack.c.h.b16 %v1022
    %v1234 = vunpack.c.l.b16 %v1023
    %v1235 = vunpack.c.l.b16 %v1024
    %v1236 = vunpack.c.h.b16 %v1024
    %v1237 = vunpack.c.l.b16 %v1025
    %v1238 = vunpack.c.l.b16 %v1026
    %v1239 = vunpack.c.h.b16 %v1026
    %v1240 = vunpack.c.l.b16 %v1027
    %v1241 = vunpack.c.l.b16 %v1028
    %v1242 = vunpack.c.h.b16 %v1028
    %v1243 = vunpack.c.l.b16 %v1029
    %v1244 = vunpack.c.l.b16 %v1030
    %v1245 = vunpack.c.h.b16 %v1030
    %v1246 = vunpack.c.l.b16 %v1031
    %v1247 = vunpack.c.l.b16 %v1032
    %v1248 = vunpack.c.h.b16 %v1032
    %v1249 = vunpack.c.l.b16 %v1033
    %v1250 = vunpack.c.l.b16 %v1034
    %v1251 = vunpack.c.h.b16 %v1034
    %v1252 = vunpack.c.l.b16 %v1035
    %v1253 = vunpack.c.l.b16 %v1036
    %v1254 = vunpack.c.h.b16 %v1036
    %v1255 = vunpack.c.l.b16 %v1037
    %v1256 = vunpack.c.l.b16 %v1038
    %v1257 = vunpack.c.h.b16 %v1038
    %v1258 = vunpack.c.l.b16 %v1039
    %v1259 = vunpack.c.l.b16 %v1040
    %v1260 = vunpack.c.h.b16 %v1040
    %v1261 = vunpack.c.l.b16 %v1041
    %v1262 = vunpack.c.l.b16 %v1042
    %v1263 = vunpack.c.h.b16 %v1042
    %v1264 = vunpack.c.l.b16 %v1043
    %v1265 = vunpack.c.l.b16 %v1044
    %v1266 = vunpack.c.h.b16 %v1044
    %v1267 = vunpack.c.l.b16 %v1045
    %v1268 = vunpack.c.l.b16 %v1046
    %v1269 = vunpack.c.h.b16 %v1046
    %v1270 = vunpack.c.l.b16 %v1047
    %v1271 = vunpack.c.l.b16 %v1048
    %v1272 = vunpack.c.h.b16 %v1048
    %v1273 = vunpack.c.l.b16 %v1049
    %v1274 = vunpack.c.l.b16 %v1050
    %v1275 = vunpack.c.h.b16 %v1050
    %v1276 = vunpack.c.l.b16 %v1051
    %v1277 = vunpack.c.l.b16 %v1052
    %v1278 = vunpack.c.h.b16 %v1052
    %v1279 = vunpack.c.l.b16 %v1053
    %v1280 = vunpack.c.l.b16 %v1054
    %v1281 = vunpack.c.h.b16 %v1054
    %v1282 = vunpack.c.l.b16 %v1055
    %v1283 = vunpack.c.l.b16 %v1056
    %v1284 = vunpack.c.h.b16 %v1056
    %v1285 = vunpack.c.l.b16 %v1057
    %v1286 = vunpack.c.l.b16 %v1058
    %v1287 = vunpack.c.h.b16 %v1058
    %v1288 = vunpack.c.l.b16 %v1059
    %v1289 = vunpack.c.l.b16 %v1060
    %v1290 = vunpack.c.h.b16 %v1060
    %v1291 = vunpack.c.l.b16 %v1061
    %v1292 = vunpack.c.l.b16 %v1062
    %v1293 = vunpack.c.h.b16 %v1062
    %v1294 = vunpack.c.l.b16 %v1063
    %v1295 = vunpack.c.l.b16 %v1064
    %v1296 = vunpack.c.h.b16 %v1064
    %v1297 = vunpack.c.l.b16 %v1065
    %v1298 = vunpack.c.l.b16 %v1066
    %v1299 = vunpack.c.h.b16 %v1066
    %v1300 = vunpack.c.l.b16 %v1067
    %v1301 = vunpack.c.l.b16 %v1068
    %v1302 = vunpack.c.h.b16 %v1068
    %v1303 = vunpack.c.l.b16 %v1069
    %v1304 = vunpack.c.l.b16 %v1070
    %v1305 = vunpack.c.h.b16 %v1070
    %v1306 = vunpack.c.l.b16 %v1071
    %v1307 = vunpack.c.l.b16 %v1072
    %v1308 = vunpack.c.h.b16 %v1072
    %v1309 = vunpack.c.l.b16 %v1073
    %v1310 = vunpack.c.l.b16 %v1074
    %v1311 = vunpack.c.h.b16 %v1074
    %v1312 = vunpack.c.l.b16 %v1075
    %v1313 = vunpack.c.l.b16 %v1076
    %v1314 = vunpack.c.h.b16 %v1076
    %v1315 = vunpack.c.l.b16 %v1077
    %v1316 = vunpack.c.l.b16 %v1078
    %v1317 = vunpack.c.h.b16 %v1078
    %v1318 = vunpack.c.l.b16 %v1079
    %v1319 = vunpack.c.l.b16 %v1080
    %v1320 = vunpack.c.h.b16 %v1080
    %v1321 = vunpack.c.l.b16 %v1081
    %v1322 = vunpack.c.l.b16 %v1082
    %v1323 = vunpack.c.h.b16 %v1082
    %v1324 = vunpack.c.l.b16 %v1083
    %v1325 = vunpack.c.l.b16 %v1084
    %v1326 = vunpack.c.h.b16 %v1084
    %v1327 = vunpack.c.l.b16 %v1085
    %v1328 = vunpack.c.l.b16 %v1086
    %v1329 = vunpack.c.h.b16 %v1086
    %v1330 = vunpack.c.l.b16 %v1087
    %v1331 = vunpack.c.l.b16 %v1088
    %v1332 = vunpack.c.h.b16 %v1088
    %v1333 = vunpack.c.l.b16 %v1089
    %v1334 = vunpack.c.l.b16 %v1090
    %v1335 = vunpack.c.h.b16 %v1090
    %v1336 = vunpack.c.l.b16 %v1091
    %v1337 = vunpack.c.l.b16 %v1092
    %v1338 = vunpack.c.h.b16 %v1092
    %v1339 = vunpack.c.l.b16 %v1093
    %v1340 = vunpack.c.l.b16 %v1094
    %v1341 = vunpack.c.h.b16 %v1094
    %v1342 = vunpack.c.l.b16 %v1095
    %v1343 = vunpack.c.l.b16 %v1096
    %v1344 = vunpack.c.h.b16 %v1096
    %v1345 = vunpack.c.l.b16 %v1097
    %v1346 = vunpack.c.l.b16 %v1098
    %v1347 = vunpack.c.h.b16 %v1098
    %v1348 = vunpack.c.l.b16 %v1099
    %v1349 = vunpack.c.l.b16 %v1100
    %v1350 = vunpack.c.h.b16 %v1100
    %v1351 = vunpack.c.l.b16 %v1101
    %v1352 = vunpack.c.l.b16 %v1102
    %v1353 = vunpack.c.h.b16 %v1102
    %v1354 = vunpack.c.l.b16 %v1103
    %v1355 = vunpack.c.l.b16 %v1104
    %v1356 = vunpack.c.h.b16 %v1104
    %v1357 = vunpack.c.l.b16 %v1105
    %v1358 = vunpack.c.l.b16 %v1106
    %v1359 = vunpack.c.h.b16 %v1106
    %v1360 = vunpack.c.l.b16 %v1107
    %v1361 = vunpack.c.l.b16 %v1108
    %v1362 = vunpack.c.h.b16 %v1108
    %v1363 = vunpack.c.l.b16 %v1109
    %v1364 = vunpack.c.l.b16 %v1110
    %v1365 = vunpack.c.h.b16 %v1110
    %v1366 = vunpack.c.l.b16 %v1111
    %v1367 = vunpack.c.l.b16 %v1112
    %v1368 = vunpack.c.h.b16 %v1112
    %v1369 = vunpack.c.l.b16 %v1113
    %v1370 = vunpack.c.l.b16 %v1114
    %v1371 = vunpack.c.h.b16 %v1114
    %v1372 = vunpack.c.l.b16 %v1115
    %v1373 = vpack.c.b16 %v1232, %v1229
    %v1374 = vpack.c.b16 %v1233, %v1230
    %v1375 = vpack.c.b16 %v1234, %v1231
    %v1376 = vpack.c.b16 %v1238, %v1235
    %v1377 = vpack.c.b16 %v1239, %v1236
    %v1378 = vpack.c.b16 %v1240, %v1237
    %v1379 = vpack.c.b16 %v1244, %v1241
    %v1380 = vpack.c.b16 %v1245, %v1242
    %v1381 = vpack.c.b16 %v1246, %v1243
    %v1382 = vpack.c.b16 %v1250, %v1247
    %v1383 = vpack.c.b16 %v1251, %v1248
    %v1384 = vpack.c.b16 %v1252, %v1249
    %v1385 = vpack.c.b16 %v1256, %v1253
    %v1386 = vpack.c.b16 %v1257, %v1254
    %v1387 = vpack.c.b16 %v1258, %v1255
    %v1388 = vpack.c.b16 %v1262, %v1259
    %v1389 = vpack.c.b16 %v1263, %v1260
    %v1390 = vpack.c.b16 %v1264, %v1261
    %v1391 = vpack.c.b16 %v1268, %v1265
    %v1392 = vpack.c.b16 %v1269, %v1266
    %v1393 = vpack.c.b16 %v1270, %v1267
    %v1394 = vpack.c.b16 %v1274, %v1271
    %v1395 = vpack.c.b16 %v1275, %v1272
    %v1396 = vpack.c.b16 %v1276, %v1273
    %v1397 = vpack.c.b16 %v1280, %v1277
    %v1398 = vpack.c.b16 %v1281, %v1278
    %v1399 = vpack.c.b16 %v1282, %v1279
    %v1400 = vpack.c.b16 %v1286, %v1283
    %v1401 = vpack.c.b16 %v1287, %v1284
    %v1402 = vpack.c.b16 %v1288, %v1285
    %v1403 = vpack.c.b16 %v1292, %v1289
    %v1404 = vpack.c.b16 %v1293, %v1290
    %v1405 = vpack.c.b16 %v1294, %v1291
    %v1406 = vpack.c.b16 %v1298, %v1295
    %v1407 = vpack.c.b16 %v1299, %v1296
    %v1408 = vpack.c.b16 %v1300, %v1297
    %v1409 = vpack.c.b16 %v1304, %v1301
    %v1410 = vpack.c.b16 %v1305, %v1302
    %v1411 = vpack.c.b16 %v1306, %v1303
    %v1412 = vpack.c.b16 %v1310, %v1307
    %v1413 = vpack.c.b16 %v1311, %v1308
    %v1414 = vpack.c.b16 %v1312, %v1309
    %v1415 = vpack.c.b16 %v1316, %v1313
    %v1416 = vpack.c.b16 %v1317, %v1314
    %v1417 = vpack.c.b16 %v1318, %v1315
    %v1418 = vpack.c.b16 %v1322, %v1319
    %v1419 = vpack.c.b16 %v1323, %v1320
    %v1420 = vpack.c.b16 %v1324, %v1321
    %v1421 = vpack.c.b16 %v1328, %v1325
    %v1422 = vpack.c.b16 %v1329, %v1326
    %v1423 = vpack.c.b16 %v1330, %v1327
    %v1424 = vpack.c.b16 %v1334, %v1331
    %v1425 = vpack.c.b16 %v1335, %v1332
    %v1426 = vpack.c.b16 %v1336, %v1333
    %v1427 = vpack.c.b16 %v1340, %v1337
    %v1428 = vpack.c.b16 %v1341, %v1338
    %v1429 = vpack.c.b16 %v1342, %v1339
    %v1430 = vpack.c.b16 %v1346, %v1343
    %v1431 = vpack.c.b16 %v1347, %v1344
    %v1432 = vpack.c.b16 %v1348, %v1345
    %v1433 = vpack.c.b16 %v1352, %v1349
    %v1434 = vpack.c.b16 %v1353, %v1350
    %v1435 = vpack.c.b16 %v1354, %v1351
    %v1436 = vpack.c.b16 %v1358, %v1355
    %v1437 = vpack.c.b16 %v1359, %v1356
    %v1438 = vpack.c.b16 %v1360, %v1357
    %v1439 = vpack.c.b16 %v1364, %v1361
    %v1440 = vpack.c.b16 %v1365, %v1362
    %v1441 = vpack.c.b16 %v1366, %v1363
    %v1442 = vpack.c.b16 %v1370, %v1367
    %v1443 = vpack.c.b16 %v1371, %v1368
    %v1444 = vpack.c.b16 %v1372, %v1369
    %1517 = vmatprep.subr.bf16.mxu0 %v1395
    %1518 = vmatpush1.bf16.msra.mxu0 %v1394
    %1519 = vmatprep.subr.bf16.mxu0 %v1392
    %1520 = vmatpush1.bf16.msra.mxu0 %v1391
    %1521 = vmatprep.subr.bf16.mxu0 %v1389
    %1522 = vmatpush1.bf16.msra.mxu0 %v1388
    %1523 = vmatprep.subr.bf16.mxu0 %v1386
    %1524 = vmatpush1.bf16.msra.mxu0 %v1385
    %1525 = vmatprep.subr.bf16.mxu0 %v1383
    %1526 = vmatpush1.bf16.msra.mxu0 %v1382
    %1527 = vmatprep.subr.bf16.mxu0 %v1380
    %1528 = vmatpush1.bf16.msra.mxu0 %v1379
    %1529 = vmatprep.subr.bf16.mxu0 %v1377
    %1530 = vmatpush1.bf16.msra.mxu0 %v1376
    %1531 = vmatprep.subr.bf16.mxu0 %v1374
    %1532 = vmatpush1.bf16.msra.mxu0 %v1373
    %1533 = vmatprep.subr.bf16.mxu0 %v1419
    %1534 = vmatpush2.bf16.msra.mxu0 %v1418
    %1535 = vmatprep.subr.bf16.mxu0 %v1416
    %1536 = vmatpush2.bf16.msra.mxu0 %v1415
    %1537 = vmatprep.subr.bf16.mxu0 %v1413
    %1538 = vmatpush2.bf16.msra.mxu0 %v1412
    %1539 = vmatprep.subr.bf16.mxu0 %v1410
    %1540 = vmatpush2.bf16.msra.mxu0 %v1409
    %1541 = vmatprep.subr.bf16.mxu0 %v1407
    %1542 = vmatpush2.bf16.msra.mxu0 %v1406
    %1543 = vmatprep.subr.bf16.mxu0 %v1404
    %1544 = vmatpush2.bf16.msra.mxu0 %v1403
    %1545 = vmatprep.subr.bf16.mxu0 %v1401
    %1546 = vmatpush2.bf16.msra.mxu0 %v1400
    %1547 = vmatprep.subr.bf16.mxu0 %v1398
    %1548 = vmatpush2.bf16.msra.mxu0 %v1397
    %1549 = vmatprep.mubr.bf16.mxu0 %v1018
    %1550 = vmatmul.mubr.bf16.gmra.mxu0 %v1017
    %v1551 = vpop.f32.mrf.mxu0
    %v1552 = vadd.f32 %v1121, %v1551
    %v1553 = vpop.f32.mrf.mxu0
    %v1554 = vadd.f32 %v1125, %v1553
    %v1555 = vpop.f32.mrf.mxu0
    %v1556 = vpop.f32.mrf.mxu0
    %1557 = vdwg.mxu0
    %1558 = vmatprep.subr.bf16.mxu0 %v1443
    %1559 = vmatpush1.bf16.msra.mxu0 %v1442
    %1560 = vmatprep.subr.bf16.mxu0 %v1440
    %1561 = vmatpush1.bf16.msra.mxu0 %v1439
    %1562 = vmatprep.subr.bf16.mxu0 %v1437
    %1563 = vmatpush1.bf16.msra.mxu0 %v1436
    %1564 = vmatprep.subr.bf16.mxu0 %v1434
    %1565 = vmatpush1.bf16.msra.mxu0 %v1433
    %1566 = vmatprep.subr.bf16.mxu0 %v1431
    %1567 = vmatpush1.bf16.msra.mxu0 %v1430
    %1568 = vmatprep.subr.bf16.mxu0 %v1428
    %1569 = vmatpush1.bf16.msra.mxu0 %v1427
    %1570 = vmatprep.subr.bf16.mxu0 %v1425
    %1571 = vmatpush1.bf16.msra.mxu0 %v1424
    %1572 = vmatprep.subr.bf16.mxu0 %v1422
    %1573 = vmatpush1.bf16.msra.mxu0 %v1421
    %1574 = vmatprep.subr.bf16.mxu0 0
    %1575 = vmatpush2.bf16.msra.mxu0 0
    %1576 = vmatprep.subr.bf16.mxu0 0
    %1577 = vmatpush2.bf16.msra.mxu0 0
    %1578 = vmatprep.subr.bf16.mxu0 0
    %1579 = vmatpush2.bf16.msra.mxu0 0
    %1580 = vmatprep.subr.bf16.mxu0 0
    %1581 = vmatpush2.bf16.msra.mxu0 0
    %1582 = vmatprep.subr.bf16.mxu0 0
    %1583 = vmatpush2.bf16.msra.mxu0 0
    %1584 = vmatprep.subr.bf16.mxu0 0
    %1585 = vmatpush2.bf16.msra.mxu0 0
    %1586 = vmatprep.subr.bf16.mxu0 0
    %1587 = vmatpush2.bf16.msra.mxu0 0
    %1588 = vmatprep.subr.bf16.mxu0 0
    %1589 = vmatpush2.bf16.msra.mxu0 0
    %1590 = vmatprep.mubr.bf16.mxu0 0
    %1591 = vmatmul.mubr.bf16.gmra.mxu0 %v1019
    %v1592 = vpop.f32.mrf.mxu0
    %v1593 = vadd.f32 %v1552, %v1592
    %v1594 = vpop.f32.mrf.mxu0
    %v1595 = vadd.f32 %v1554, %v1594
    %v1596 = vpop.f32.mrf.mxu0
    %v1597 = vpop.f32.mrf.mxu0
    %1598 = vdwg.mxu0
    %1599 = vmatprep.subr.bf16.mxu0 0
    %1600 = vmatpush1.bf16.msra.mxu0 %v1396
    %1601 = vmatprep.subr.bf16.mxu0 0
    %1602 = vmatpush1.bf16.msra.mxu0 %v1393
    %1603 = vmatprep.subr.bf16.mxu0 0
    %1604 = vmatpush1.bf16.msra.mxu0 %v1390
    %1605 = vmatprep.subr.bf16.mxu0 0
    %1606 = vmatpush1.bf16.msra.mxu0 %v1387
    %1607 = vmatprep.subr.bf16.mxu0 0
    %1608 = vmatpush1.bf16.msra.mxu0 %v1384
    %1609 = vmatprep.subr.bf16.mxu0 0
    %1610 = vmatpush1.bf16.msra.mxu0 %v1381
    %1611 = vmatprep.subr.bf16.mxu0 0
    %1612 = vmatpush1.bf16.msra.mxu0 %v1378
    %1613 = vmatprep.subr.bf16.mxu0 0
    %1614 = vmatpush1.bf16.msra.mxu0 %v1375
    %1615 = vmatprep.subr.bf16.mxu0 0
    %1616 = vmatpush2.bf16.msra.mxu0 %v1420
    %1617 = vmatprep.subr.bf16.mxu0 0
    %1618 = vmatpush2.bf16.msra.mxu0 %v1417
    %1619 = vmatprep.subr.bf16.mxu0 0
    %1620 = vmatpush2.bf16.msra.mxu0 %v1414
    %1621 = vmatprep.subr.bf16.mxu0 0
    %1622 = vmatpush2.bf16.msra.mxu0 %v1411
    %1623 = vmatprep.subr.bf16.mxu0 0
    %1624 = vmatpush2.bf16.msra.mxu0 %v1408
    %1625 = vmatprep.subr.bf16.mxu0 0
    %1626 = vmatpush2.bf16.msra.mxu0 %v1405
    %1627 = vmatprep.subr.bf16.mxu0 0
    %1628 = vmatpush2.bf16.msra.mxu0 %v1402
    %1629 = vmatprep.subr.bf16.mxu0 0
    %1630 = vmatpush2.bf16.msra.mxu0 %v1399
    %1631 = vmatprep.mubr.bf16.mxu0 %v1018
    %1632 = vmatmul.mubr.bf16.gmra.mxu0 %v1017
    %v1633 = vpop.f32.mrf.mxu0
    %v1634 = vadd.f32 %v1129, %v1633
    %v1635 = vpop.f32.mrf.mxu0
    %v1636 = vpop.f32.mrf.mxu0
    %v1637 = vpop.f32.mrf.mxu0
    %1638 = vdwg.mxu0
    %1639 = vmatprep.subr.bf16.mxu0 0
    %1640 = vmatpush1.bf16.msra.mxu0 %v1444
    %1641 = vmatprep.subr.bf16.mxu0 0
    %1642 = vmatpush1.bf16.msra.mxu0 %v1441
    %1643 = vmatprep.subr.bf16.mxu0 0
    %1644 = vmatpush1.bf16.msra.mxu0 %v1438
    %1645 = vmatprep.subr.bf16.mxu0 0
    %1646 = vmatpush1.bf16.msra.mxu0 %v1435
    %1647 = vmatprep.subr.bf16.mxu0 0
    %1648 = vmatpush1.bf16.msra.mxu0 %v1432
    %1649 = vmatprep.subr.bf16.mxu0 0
    %1650 = vmatpush1.bf16.msra.mxu0 %v1429
    %1651 = vmatprep.subr.bf16.mxu0 0
    %1652 = vmatpush1.bf16.msra.mxu0 %v1426
    %1653 = vmatprep.subr.bf16.mxu0 0
    %1654 = vmatpush1.bf16.msra.mxu0 %v1423
    %1655 = vmatprep.subr.bf16.mxu0 0
    %1656 = vmatpush2.bf16.msra.mxu0 0
    %1657 = vmatprep.subr.bf16.mxu0 0
    %1658 = vmatpush2.bf16.msra.mxu0 0
    %1659 = vmatprep.subr.bf16.mxu0 0
    %1660 = vmatpush2.bf16.msra.mxu0 0
    %1661 = vmatprep.subr.bf16.mxu0 0
    %1662 = vmatpush2.bf16.msra.mxu0 0
    %1663 = vmatprep.subr.bf16.mxu0 0
    %1664 = vmatpush2.bf16.msra.mxu0 0
    %1665 = vmatprep.subr.bf16.mxu0 0
    %1666 = vmatpush2.bf16.msra.mxu0 0
    %1667 = vmatprep.subr.bf16.mxu0 0
    %1668 = vmatpush2.bf16.msra.mxu0 0
    %1669 = vmatprep.subr.bf16.mxu0 0
    %1670 = vmatpush2.bf16.msra.mxu0 0
    %1671 = vmatprep.mubr.bf16.mxu0 0
    %1672 = vmatmul.mubr.bf16.gmra.mxu0 %v1019
    %v1673 = vpop.f32.mrf.mxu0
    %v1674 = vadd.f32 %v1634, %v1673
    %v1675 = vpop.f32.mrf.mxu0
    %v1676 = vpop.f32.mrf.mxu0
    %v1677 = vpop.f32.mrf.mxu0
    %1678 = vdwg.mxu0
    %v1679 = vmax.f32 %v1593, 0.0
    %v1680 = vmax.f32 %v1595, 0.0
    %v1681 = vmax.f32 %v1674, 0.0
    %v1682 = vpack.c.bf16 %v1679, %v1679
    %v1683 = vpack.c.bf16 %v1680, %v1680
    %v1684 = vpack.c.bf16 %v1681, %v1681
    %v1685 = vld [vmem:[#allocation13] sm:$0xff]
    %v1686 = vld [vmem:[#allocation13 + $0x8] sm:$0xf]
    %v1687 = vld [vmem:[#allocation13 + $0xc] sm:$0xff]
    %v1688 = vld [vmem:[#allocation13 + $0x14] sm:$0xf]
    %v1689 = vld [vmem:[#allocation13 + $0x18] sm:$0xff]
    %v1690 = vld [vmem:[#allocation13 + $0x20] sm:$0xf]
    %v1691 = vld [vmem:[#allocation13 + $0x24] sm:$0xff]
    %v1692 = vld [vmem:[#allocation13 + $0x2c] sm:$0xf]
    %v1693 = vld [vmem:[#allocation13 + $0x30] sm:$0xff]
    %v1694 = vld [vmem:[#allocation13 + $0x38] sm:$0xf]
    %v1695 = vld [vmem:[#allocation13 + $0x3c] sm:$0xff]
    %v1696 = vld [vmem:[#allocation13 + $0x44] sm:$0xf]
    %v1697 = vld [vmem:[#allocation13 + $0x48] sm:$0xff]
    %v1698 = vld [vmem:[#allocation13 + $0x50] sm:$0xf]
    %v1699 = vld [vmem:[#allocation13 + $0x54] sm:$0xff]
    %v1700 = vld [vmem:[#allocation13 + $0x5c] sm:$0xf]
    %v1701 = vld [vmem:[#allocation13 + $0x60] sm:$0xff]
    %v1702 = vld [vmem:[#allocation13 + $0x68] sm:$0xf]
    %v1703 = vld [vmem:[#allocation13 + $0x6c] sm:$0xff]
    %v1704 = vld [vmem:[#allocation13 + $0x74] sm:$0xf]
    %v1705 = vld [vmem:[#allocation13 + $0x78] sm:$0xff]
    %v1706 = vld [vmem:[#allocation13 + $0x80] sm:$0xf]
    %v1707 = vld [vmem:[#allocation13 + $0x84] sm:$0xff]
    %v1708 = vld [vmem:[#allocation13 + $0x8c] sm:$0xf]
    %v1709 = vld [vmem:[#allocation13 + $0x90] sm:$0xff]
    %v1710 = vld [vmem:[#allocation13 + $0x98] sm:$0xf]
    %v1711 = vld [vmem:[#allocation13 + $0x9c] sm:$0xff]
    %v1712 = vld [vmem:[#allocation13 + $0xa4] sm:$0xf]
    %v1713 = vld [vmem:[#allocation13 + $0xa8] sm:$0xff]
    %v1714 = vld [vmem:[#allocation13 + $0xb0] sm:$0xf]
    %v1715 = vld [vmem:[#allocation13 + $0xb4] sm:$0xff]
    %v1716 = vld [vmem:[#allocation13 + $0xbc] sm:$0xf]
    %v1717 = vld [vmem:[#allocation13 + $0xc0] sm:$0xff]
    %v1718 = vld [vmem:[#allocation13 + $0xc8] sm:$0xf]
    %v1719 = vld [vmem:[#allocation13 + $0xcc] sm:$0xff]
    %v1720 = vld [vmem:[#allocation13 + $0xd4] sm:$0xf]
    %v1721 = vld [vmem:[#allocation13 + $0xd8] sm:$0xff]
    %v1722 = vld [vmem:[#allocation13 + $0xe0] sm:$0xf]
    %v1723 = vld [vmem:[#allocation13 + $0xe4] sm:$0xff]
    %v1724 = vld [vmem:[#allocation13 + $0xec] sm:$0xf]
    %v1725 = vld [vmem:[#allocation13 + $0xf0] sm:$0xff]
    %v1726 = vld [vmem:[#allocation13 + $0xf8] sm:$0xf]
    %v1727 = vld [vmem:[#allocation13 + $0xfc] sm:$0xff]
    %v1728 = vld [vmem:[#allocation13 + $0x104] sm:$0xf]
    %v1729 = vld [vmem:[#allocation13 + $0x108] sm:$0xff]
    %v1730 = vld [vmem:[#allocation13 + $0x110] sm:$0xf]
    %v1731 = vld [vmem:[#allocation13 + $0x114] sm:$0xff]
    %v1732 = vld [vmem:[#allocation13 + $0x11c] sm:$0xf]
    %v1733 = vld [vmem:[#allocation13 + $0x120] sm:$0xff]
    %v1734 = vld [vmem:[#allocation13 + $0x128] sm:$0xf]
    %v1735 = vld [vmem:[#allocation13 + $0x12c] sm:$0xff]
    %v1736 = vld [vmem:[#allocation13 + $0x134] sm:$0xf]
    %v1737 = vld [vmem:[#allocation13 + $0x138] sm:$0xff]
    %v1738 = vld [vmem:[#allocation13 + $0x140] sm:$0xf]
    %v1739 = vld [vmem:[#allocation13 + $0x144] sm:$0xff]
    %v1740 = vld [vmem:[#allocation13 + $0x14c] sm:$0xf]
    %v1741 = vld [vmem:[#allocation13 + $0x150] sm:$0xff]
    %v1742 = vld [vmem:[#allocation13 + $0x158] sm:$0xf]
    %v1743 = vld [vmem:[#allocation13 + $0x15c] sm:$0xff]
    %v1744 = vld [vmem:[#allocation13 + $0x164] sm:$0xf]
    %v1745 = vld [vmem:[#allocation13 + $0x168] sm:$0xff]
    %v1746 = vld [vmem:[#allocation13 + $0x170] sm:$0xf]
    %v1747 = vld [vmem:[#allocation13 + $0x174] sm:$0xff]
    %v1748 = vld [vmem:[#allocation13 + $0x17c] sm:$0xf]
    %v1749 = vld [vmem:[#allocation13 + $0x180] sm:$0xff]
    %v1750 = vld [vmem:[#allocation13 + $0x188] sm:$0xf]
    %v1751 = vld [vmem:[#allocation13 + $0x18c] sm:$0xff]
    %v1752 = vld [vmem:[#allocation13 + $0x194] sm:$0xf]
    %v1753 = vld [vmem:[#allocation13 + $0x198] sm:$0xff]
    %v1754 = vld [vmem:[#allocation13 + $0x1a0] sm:$0xf]
    %v1755 = vld [vmem:[#allocation13 + $0x1a4] sm:$0xff]
    %v1756 = vld [vmem:[#allocation13 + $0x1ac] sm:$0xf]
    %v1757 = vld [vmem:[#allocation13 + $0x1b0] sm:$0xff]
    %v1758 = vld [vmem:[#allocation13 + $0x1b8] sm:$0xf]
    %v1759 = vld [vmem:[#allocation13 + $0x1bc] sm:$0xff]
    %v1760 = vld [vmem:[#allocation13 + $0x1c4] sm:$0xf]
    %v1761 = vld [vmem:[#allocation13 + $0x1c8] sm:$0xff]
    %v1762 = vld [vmem:[#allocation13 + $0x1d0] sm:$0xf]
    %v1763 = vld [vmem:[#allocation13 + $0x1d4] sm:$0xff]
    %v1764 = vld [vmem:[#allocation13 + $0x1dc] sm:$0xf]
    %v1765 = vld [vmem:[#allocation13 + $0x1e0] sm:$0xff]
    %v1766 = vld [vmem:[#allocation13 + $0x1e8] sm:$0xf]
    %v1767 = vld [vmem:[#allocation13 + $0x1ec] sm:$0xff]
    %v1768 = vld [vmem:[#allocation13 + $0x1f4] sm:$0xf]
    %v1769 = vld [vmem:[#allocation13 + $0x1f8] sm:$0xff]
    %v1770 = vld [vmem:[#allocation13 + $0x200] sm:$0xf]
    %v1771 = vld [vmem:[#allocation13 + $0x204] sm:$0xff]
    %v1772 = vld [vmem:[#allocation13 + $0x20c] sm:$0xf]
    %v1773 = vld [vmem:[#allocation13 + $0x210] sm:$0xff]
    %v1774 = vld [vmem:[#allocation13 + $0x218] sm:$0xf]
    %v1775 = vld [vmem:[#allocation13 + $0x21c] sm:$0xff]
    %v1776 = vld [vmem:[#allocation13 + $0x224] sm:$0xf]
    %v1777 = vld [vmem:[#allocation13 + $0x228] sm:$0xff]
    %v1778 = vld [vmem:[#allocation13 + $0x230] sm:$0xf]
    %v1779 = vld [vmem:[#allocation13 + $0x234] sm:$0xff]
    %v1780 = vld [vmem:[#allocation13 + $0x23c] sm:$0xf]
    %v1781 = vld [vmem:[%s10] sm:$0x7]
    %v1783 = vlaneseq
    %v1784 = vshrl.u32 %v1783, 7
    %v1785 = vsub.s32 0, %v1784
    %v1786 = vrot.slane %v1781, %v1785
    %v1787 = vlaneseq
    %v1788 = vshrl.u32 %v1787, 7
    %v1789 = vsub.s32 1, %v1788
    %v1790 = vrot.slane %v1781, %v1789
    %v1791 = vlaneseq
    %v1792 = vshrl.u32 %v1791, 7
    %v1793 = vsub.s32 2, %v1792
    %v1794 = vrot.slane %v1781, %v1793
    %v1894 = vunpack.c.l.b16 %v1685
    %v1895 = vunpack.c.h.b16 %v1685
    %v1896 = vunpack.c.l.b16 %v1686
    %v1897 = vunpack.c.l.b16 %v1687
    %v1898 = vunpack.c.h.b16 %v1687
    %v1899 = vunpack.c.l.b16 %v1688
    %v1900 = vunpack.c.l.b16 %v1689
    %v1901 = vunpack.c.h.b16 %v1689
    %v1902 = vunpack.c.l.b16 %v1690
    %v1903 = vunpack.c.l.b16 %v1691
    %v1904 = vunpack.c.h.b16 %v1691
    %v1905 = vunpack.c.l.b16 %v1692
    %v1906 = vunpack.c.l.b16 %v1693
    %v1907 = vunpack.c.h.b16 %v1693
    %v1908 = vunpack.c.l.b16 %v1694
    %v1909 = vunpack.c.l.b16 %v1695
    %v1910 = vunpack.c.h.b16 %v1695
    %v1911 = vunpack.c.l.b16 %v1696
    %v1912 = vunpack.c.l.b16 %v1697
    %v1913 = vunpack.c.h.b16 %v1697
    %v1914 = vunpack.c.l.b16 %v1698
    %v1915 = vunpack.c.l.b16 %v1699
    %v1916 = vunpack.c.h.b16 %v1699
    %v1917 = vunpack.c.l.b16 %v1700
    %v1918 = vunpack.c.l.b16 %v1701
    %v1919 = vunpack.c.h.b16 %v1701
    %v1920 = vunpack.c.l.b16 %v1702
    %v1921 = vunpack.c.l.b16 %v1703
    %v1922 = vunpack.c.h.b16 %v1703
    %v1923 = vunpack.c.l.b16 %v1704
    %v1924 = vunpack.c.l.b16 %v1705
    %v1925 = vunpack.c.h.b16 %v1705
    %v1926 = vunpack.c.l.b16 %v1706
    %v1927 = vunpack.c.l.b16 %v1707
    %v1928 = vunpack.c.h.b16 %v1707
    %v1929 = vunpack.c.l.b16 %v1708
    %v1930 = vunpack.c.l.b16 %v1709
    %v1931 = vunpack.c.h.b16 %v1709
    %v1932 = vunpack.c.l.b16 %v1710
    %v1933 = vunpack.c.l.b16 %v1711
    %v1934 = vunpack.c.h.b16 %v1711
    %v1935 = vunpack.c.l.b16 %v1712
    %v1936 = vunpack.c.l.b16 %v1713
    %v1937 = vunpack.c.h.b16 %v1713
    %v1938 = vunpack.c.l.b16 %v1714
    %v1939 = vunpack.c.l.b16 %v1715
    %v1940 = vunpack.c.h.b16 %v1715
    %v1941 = vunpack.c.l.b16 %v1716
    %v1942 = vunpack.c.l.b16 %v1717
    %v1943 = vunpack.c.h.b16 %v1717
    %v1944 = vunpack.c.l.b16 %v1718
    %v1945 = vunpack.c.l.b16 %v1719
    %v1946 = vunpack.c.h.b16 %v1719
    %v1947 = vunpack.c.l.b16 %v1720
    %v1948 = vunpack.c.l.b16 %v1721
    %v1949 = vunpack.c.h.b16 %v1721
    %v1950 = vunpack.c.l.b16 %v1722
    %v1951 = vunpack.c.l.b16 %v1723
    %v1952 = vunpack.c.h.b16 %v1723
    %v1953 = vunpack.c.l.b16 %v1724
    %v1954 = vunpack.c.l.b16 %v1725
    %v1955 = vunpack.c.h.b16 %v1725
    %v1956 = vunpack.c.l.b16 %v1726
    %v1957 = vunpack.c.l.b16 %v1727
    %v1958 = vunpack.c.h.b16 %v1727
    %v1959 = vunpack.c.l.b16 %v1728
    %v1960 = vunpack.c.l.b16 %v1729
    %v1961 = vunpack.c.h.b16 %v1729
    %v1962 = vunpack.c.l.b16 %v1730
    %v1963 = vunpack.c.l.b16 %v1731
    %v1964 = vunpack.c.h.b16 %v1731
    %v1965 = vunpack.c.l.b16 %v1732
    %v1966 = vunpack.c.l.b16 %v1733
    %v1967 = vunpack.c.h.b16 %v1733
    %v1968 = vunpack.c.l.b16 %v1734
    %v1969 = vunpack.c.l.b16 %v1735
    %v1970 = vunpack.c.h.b16 %v1735
    %v1971 = vunpack.c.l.b16 %v1736
    %v1972 = vunpack.c.l.b16 %v1737
    %v1973 = vunpack.c.h.b16 %v1737
    %v1974 = vunpack.c.l.b16 %v1738
    %v1975 = vunpack.c.l.b16 %v1739
    %v1976 = vunpack.c.h.b16 %v1739
    %v1977 = vunpack.c.l.b16 %v1740
    %v1978 = vunpack.c.l.b16 %v1741
    %v1979 = vunpack.c.h.b16 %v1741
    %v1980 = vunpack.c.l.b16 %v1742
    %v1981 = vunpack.c.l.b16 %v1743
    %v1982 = vunpack.c.h.b16 %v1743
    %v1983 = vunpack.c.l.b16 %v1744
    %v1984 = vunpack.c.l.b16 %v1745
    %v1985 = vunpack.c.h.b16 %v1745
    %v1986 = vunpack.c.l.b16 %v1746
    %v1987 = vunpack.c.l.b16 %v1747
    %v1988 = vunpack.c.h.b16 %v1747
    %v1989 = vunpack.c.l.b16 %v1748
    %v1990 = vunpack.c.l.b16 %v1749
    %v1991 = vunpack.c.h.b16 %v1749
    %v1992 = vunpack.c.l.b16 %v1750
    %v1993 = vunpack.c.l.b16 %v1751
    %v1994 = vunpack.c.h.b16 %v1751
    %v1995 = vunpack.c.l.b16 %v1752
    %v1996 = vunpack.c.l.b16 %v1753
    %v1997 = vunpack.c.h.b16 %v1753
    %v1998 = vunpack.c.l.b16 %v1754
    %v1999 = vunpack.c.l.b16 %v1755
    %v2000 = vunpack.c.h.b16 %v1755
    %v2001 = vunpack.c.l.b16 %v1756
    %v2002 = vunpack.c.l.b16 %v1757
    %v2003 = vunpack.c.h.b16 %v1757
    %v2004 = vunpack.c.l.b16 %v1758
    %v2005 = vunpack.c.l.b16 %v1759
    %v2006 = vunpack.c.h.b16 %v1759
    %v2007 = vunpack.c.l.b16 %v1760
    %v2008 = vunpack.c.l.b16 %v1761
    %v2009 = vunpack.c.h.b16 %v1761
    %v2010 = vunpack.c.l.b16 %v1762
    %v2011 = vunpack.c.l.b16 %v1763
    %v2012 = vunpack.c.h.b16 %v1763
    %v2013 = vunpack.c.l.b16 %v1764
    %v2014 = vunpack.c.l.b16 %v1765
    %v2015 = vunpack.c.h.b16 %v1765
    %v2016 = vunpack.c.l.b16 %v1766
    %v2017 = vunpack.c.l.b16 %v1767
    %v2018 = vunpack.c.h.b16 %v1767
    %v2019 = vunpack.c.l.b16 %v1768
    %v2020 = vunpack.c.l.b16 %v1769
    %v2021 = vunpack.c.h.b16 %v1769
    %v2022 = vunpack.c.l.b16 %v1770
    %v2023 = vunpack.c.l.b16 %v1771
    %v2024 = vunpack.c.h.b16 %v1771
    %v2025 = vunpack.c.l.b16 %v1772
    %v2026 = vunpack.c.l.b16 %v1773
    %v2027 = vunpack.c.h.b16 %v1773
    %v2028 = vunpack.c.l.b16 %v1774
    %v2029 = vunpack.c.l.b16 %v1775
    %v2030 = vunpack.c.h.b16 %v1775
    %v2031 = vunpack.c.l.b16 %v1776
    %v2032 = vunpack.c.l.b16 %v1777
    %v2033 = vunpack.c.h.b16 %v1777
    %v2034 = vunpack.c.l.b16 %v1778
    %v2035 = vunpack.c.l.b16 %v1779
    %v2036 = vunpack.c.h.b16 %v1779
    %v2037 = vunpack.c.l.b16 %v1780
    %v2038 = vpack.c.b16 %v1897, %v1894
    %v2039 = vpack.c.b16 %v1898, %v1895
    %v2040 = vpack.c.b16 %v1899, %v1896
    %v2041 = vpack.c.b16 %v1903, %v1900
    %v2042 = vpack.c.b16 %v1904, %v1901
    %v2043 = vpack.c.b16 %v1905, %v1902
    %v2044 = vpack.c.b16 %v1909, %v1906
    %v2045 = vpack.c.b16 %v1910, %v1907
    %v2046 = vpack.c.b16 %v1911, %v1908
    %v2047 = vpack.c.b16 %v1915, %v1912
    %v2048 = vpack.c.b16 %v1916, %v1913
    %v2049 = vpack.c.b16 %v1917, %v1914
    %v2050 = vpack.c.b16 %v1921, %v1918
    %v2051 = vpack.c.b16 %v1922, %v1919
    %v2052 = vpack.c.b16 %v1923, %v1920
    %v2053 = vpack.c.b16 %v1927, %v1924
    %v2054 = vpack.c.b16 %v1928, %v1925
    %v2055 = vpack.c.b16 %v1929, %v1926
    %v2056 = vpack.c.b16 %v1933, %v1930
    %v2057 = vpack.c.b16 %v1934, %v1931
    %v2058 = vpack.c.b16 %v1935, %v1932
    %v2059 = vpack.c.b16 %v1939, %v1936
    %v2060 = vpack.c.b16 %v1940, %v1937
    %v2061 = vpack.c.b16 %v1941, %v1938
    %v2062 = vpack.c.b16 %v1945, %v1942
    %v2063 = vpack.c.b16 %v1946, %v1943
    %v2064 = vpack.c.b16 %v1947, %v1944
    %v2065 = vpack.c.b16 %v1951, %v1948
    %v2066 = vpack.c.b16 %v1952, %v1949
    %v2067 = vpack.c.b16 %v1953, %v1950
    %v2068 = vpack.c.b16 %v1957, %v1954
    %v2069 = vpack.c.b16 %v1958, %v1955
    %v2070 = vpack.c.b16 %v1959, %v1956
    %v2071 = vpack.c.b16 %v1963, %v1960
    %v2072 = vpack.c.b16 %v1964, %v1961
    %v2073 = vpack.c.b16 %v1965, %v1962
    %v2074 = vpack.c.b16 %v1969, %v1966
    %v2075 = vpack.c.b16 %v1970, %v1967
    %v2076 = vpack.c.b16 %v1971, %v1968
    %v2077 = vpack.c.b16 %v1975, %v1972
    %v2078 = vpack.c.b16 %v1976, %v1973
    %v2079 = vpack.c.b16 %v1977, %v1974
    %v2080 = vpack.c.b16 %v1981, %v1978
    %v2081 = vpack.c.b16 %v1982, %v1979
    %v2082 = vpack.c.b16 %v1983, %v1980
    %v2083 = vpack.c.b16 %v1987, %v1984
    %v2084 = vpack.c.b16 %v1988, %v1985
    %v2085 = vpack.c.b16 %v1989, %v1986
    %v2086 = vpack.c.b16 %v1993, %v1990
    %v2087 = vpack.c.b16 %v1994, %v1991
    %v2088 = vpack.c.b16 %v1995, %v1992
    %v2089 = vpack.c.b16 %v1999, %v1996
    %v2090 = vpack.c.b16 %v2000, %v1997
    %v2091 = vpack.c.b16 %v2001, %v1998
    %v2092 = vpack.c.b16 %v2005, %v2002
    %v2093 = vpack.c.b16 %v2006, %v2003
    %v2094 = vpack.c.b16 %v2007, %v2004
    %v2095 = vpack.c.b16 %v2011, %v2008
    %v2096 = vpack.c.b16 %v2012, %v2009
    %v2097 = vpack.c.b16 %v2013, %v2010
    %v2098 = vpack.c.b16 %v2017, %v2014
    %v2099 = vpack.c.b16 %v2018, %v2015
    %v2100 = vpack.c.b16 %v2019, %v2016
    %v2101 = vpack.c.b16 %v2023, %v2020
    %v2102 = vpack.c.b16 %v2024, %v2021
    %v2103 = vpack.c.b16 %v2025, %v2022
    %v2104 = vpack.c.b16 %v2029, %v2026
    %v2105 = vpack.c.b16 %v2030, %v2027
    %v2106 = vpack.c.b16 %v2031, %v2028
    %v2107 = vpack.c.b16 %v2035, %v2032
    %v2108 = vpack.c.b16 %v2036, %v2033
    %v2109 = vpack.c.b16 %v2037, %v2034
    %2182 = vmatprep.subr.bf16.mxu0 %v2060
    %2183 = vmatpush1.bf16.msra.mxu0 %v2059
    %2184 = vmatprep.subr.bf16.mxu0 %v2057
    %2185 = vmatpush1.bf16.msra.mxu0 %v2056
    %2186 = vmatprep.subr.bf16.mxu0 %v2054
    %2187 = vmatpush1.bf16.msra.mxu0 %v2053
    %2188 = vmatprep.subr.bf16.mxu0 %v2051
    %2189 = vmatpush1.bf16.msra.mxu0 %v2050
    %2190 = vmatprep.subr.bf16.mxu0 %v2048
    %2191 = vmatpush1.bf16.msra.mxu0 %v2047
    %2192 = vmatprep.subr.bf16.mxu0 %v2045
    %2193 = vmatpush1.bf16.msra.mxu0 %v2044
    %2194 = vmatprep.subr.bf16.mxu0 %v2042
    %2195 = vmatpush1.bf16.msra.mxu0 %v2041
    %2196 = vmatprep.subr.bf16.mxu0 %v2039
    %2197 = vmatpush1.bf16.msra.mxu0 %v2038
    %2198 = vmatprep.subr.bf16.mxu0 %v2084
    %2199 = vmatpush2.bf16.msra.mxu0 %v2083
    %2200 = vmatprep.subr.bf16.mxu0 %v2081
    %2201 = vmatpush2.bf16.msra.mxu0 %v2080
    %2202 = vmatprep.subr.bf16.mxu0 %v2078
    %2203 = vmatpush2.bf16.msra.mxu0 %v2077
    %2204 = vmatprep.subr.bf16.mxu0 %v2075
    %2205 = vmatpush2.bf16.msra.mxu0 %v2074
    %2206 = vmatprep.subr.bf16.mxu0 %v2072
    %2207 = vmatpush2.bf16.msra.mxu0 %v2071
    %2208 = vmatprep.subr.bf16.mxu0 %v2069
    %2209 = vmatpush2.bf16.msra.mxu0 %v2068
    %2210 = vmatprep.subr.bf16.mxu0 %v2066
    %2211 = vmatpush2.bf16.msra.mxu0 %v2065
    %2212 = vmatprep.subr.bf16.mxu0 %v2063
    %2213 = vmatpush2.bf16.msra.mxu0 %v2062
    %2214 = vmatprep.mubr.bf16.mxu0 %v1683
    %2215 = vmatmul.mubr.bf16.gmra.mxu0 %v1682
    %v2216 = vpop.f32.mrf.mxu0
    %v2217 = vadd.f32 %v1786, %v2216
    %v2218 = vpop.f32.mrf.mxu0
    %v2219 = vadd.f32 %v1790, %v2218
    %v2220 = vpop.f32.mrf.mxu0
    %v2221 = vpop.f32.mrf.mxu0
    %2222 = vdwg.mxu0
    %2223 = vmatprep.subr.bf16.mxu0 %v2108
    %2224 = vmatpush1.bf16.msra.mxu0 %v2107
    %2225 = vmatprep.subr.bf16.mxu0 %v2105
    %2226 = vmatpush1.bf16.msra.mxu0 %v2104
    %2227 = vmatprep.subr.bf16.mxu0 %v2102
    %2228 = vmatpush1.bf16.msra.mxu0 %v2101
    %2229 = vmatprep.subr.bf16.mxu0 %v2099
    %2230 = vmatpush1.bf16.msra.mxu0 %v2098
    %2231 = vmatprep.subr.bf16.mxu0 %v2096
    %2232 = vmatpush1.bf16.msra.mxu0 %v2095
    %2233 = vmatprep.subr.bf16.mxu0 %v2093
    %2234 = vmatpush1.bf16.msra.mxu0 %v2092
    %2235 = vmatprep.subr.bf16.mxu0 %v2090
    %2236 = vmatpush1.bf16.msra.mxu0 %v2089
    %2237 = vmatprep.subr.bf16.mxu0 %v2087
    %2238 = vmatpush1.bf16.msra.mxu0 %v2086
    %2239 = vmatprep.subr.bf16.mxu0 0
    %2240 = vmatpush2.bf16.msra.mxu0 0
    %2241 = vmatprep.subr.bf16.mxu0 0
    %2242 = vmatpush2.bf16.msra.mxu0 0
    %2243 = vmatprep.subr.bf16.mxu0 0
    %2244 = vmatpush2.bf16.msra.mxu0 0
    %2245 = vmatprep.subr.bf16.mxu0 0
    %2246 = vmatpush2.bf16.msra.mxu0 0
    %2247 = vmatprep.subr.bf16.mxu0 0
    %2248 = vmatpush2.bf16.msra.mxu0 0
    %2249 = vmatprep.subr.bf16.mxu0 0
    %2250 = vmatpush2.bf16.msra.mxu0 0
    %2251 = vmatprep.subr.bf16.mxu0 0
    %2252 = vmatpush2.bf16.msra.mxu0 0
    %2253 = vmatprep.subr.bf16.mxu0 0
    %2254 = vmatpush2.bf16.msra.mxu0 0
    %2255 = vmatprep.mubr.bf16.mxu0 0
    %2256 = vmatmul.mubr.bf16.gmra.mxu0 %v1684
    %v2257 = vpop.f32.mrf.mxu0
    %v2258 = vadd.f32 %v2217, %v2257
    %v2259 = vpop.f32.mrf.mxu0
    %v2260 = vadd.f32 %v2219, %v2259
    %v2261 = vpop.f32.mrf.mxu0
    %v2262 = vpop.f32.mrf.mxu0
    %2263 = vdwg.mxu0
    %2264 = vmatprep.subr.bf16.mxu0 0
    %2265 = vmatpush1.bf16.msra.mxu0 %v2061
    %2266 = vmatprep.subr.bf16.mxu0 0
    %2267 = vmatpush1.bf16.msra.mxu0 %v2058
    %2268 = vmatprep.subr.bf16.mxu0 0
    %2269 = vmatpush1.bf16.msra.mxu0 %v2055
    %2270 = vmatprep.subr.bf16.mxu0 0
    %2271 = vmatpush1.bf16.msra.mxu0 %v2052
    %2272 = vmatprep.subr.bf16.mxu0 0
    %2273 = vmatpush1.bf16.msra.mxu0 %v2049
    %2274 = vmatprep.subr.bf16.mxu0 0
    %2275 = vmatpush1.bf16.msra.mxu0 %v2046
    %2276 = vmatprep.subr.bf16.mxu0 0
    %2277 = vmatpush1.bf16.msra.mxu0 %v2043
    %2278 = vmatprep.subr.bf16.mxu0 0
    %2279 = vmatpush1.bf16.msra.mxu0 %v2040
    %2280 = vmatprep.subr.bf16.mxu0 0
    %2281 = vmatpush2.bf16.msra.mxu0 %v2085
    %2282 = vmatprep.subr.bf16.mxu0 0
    %2283 = vmatpush2.bf16.msra.mxu0 %v2082
    %2284 = vmatprep.subr.bf16.mxu0 0
    %2285 = vmatpush2.bf16.msra.mxu0 %v2079
    %2286 = vmatprep.subr.bf16.mxu0 0
    %2287 = vmatpush2.bf16.msra.mxu0 %v2076
    %2288 = vmatprep.subr.bf16.mxu0 0
    %2289 = vmatpush2.bf16.msra.mxu0 %v2073
    %2290 = vmatprep.subr.bf16.mxu0 0
    %2291 = vmatpush2.bf16.msra.mxu0 %v2070
    %2292 = vmatprep.subr.bf16.mxu0 0
    %2293 = vmatpush2.bf16.msra.mxu0 %v2067
    %2294 = vmatprep.subr.bf16.mxu0 0
    %2295 = vmatpush2.bf16.msra.mxu0 %v2064
    %2296 = vmatprep.mubr.bf16.mxu0 %v1683
    %2297 = vmatmul.mubr.bf16.gmra.mxu0 %v1682
    %v2298 = vpop.f32.mrf.mxu0
    %v2299 = vadd.f32 %v1794, %v2298
    %v2300 = vpop.f32.mrf.mxu0
    %v2301 = vpop.f32.mrf.mxu0
    %v2302 = vpop.f32.mrf.mxu0
    %2303 = vdwg.mxu0
    %2304 = vmatprep.subr.bf16.mxu0 0
    %2305 = vmatpush1.bf16.msra.mxu0 %v2109
    %2306 = vmatprep.subr.bf16.mxu0 0
    %2307 = vmatpush1.bf16.msra.mxu0 %v2106
    %2308 = vmatprep.subr.bf16.mxu0 0
    %2309 = vmatpush1.bf16.msra.mxu0 %v2103
    %2310 = vmatprep.subr.bf16.mxu0 0
    %2311 = vmatpush1.bf16.msra.mxu0 %v2100
    %2312 = vmatprep.subr.bf16.mxu0 0
    %2313 = vmatpush1.bf16.msra.mxu0 %v2097
    %2314 = vmatprep.subr.bf16.mxu0 0
    %2315 = vmatpush1.bf16.msra.mxu0 %v2094
    %2316 = vmatprep.subr.bf16.mxu0 0
    %2317 = vmatpush1.bf16.msra.mxu0 %v2091
    %2318 = vmatprep.subr.bf16.mxu0 0
    %2319 = vmatpush1.bf16.msra.mxu0 %v2088
    %2320 = vmatprep.subr.bf16.mxu0 0
    %2321 = vmatpush2.bf16.msra.mxu0 0
    %2322 = vmatprep.subr.bf16.mxu0 0
    %2323 = vmatpush2.bf16.msra.mxu0 0
    %2324 = vmatprep.subr.bf16.mxu0 0
    %2325 = vmatpush2.bf16.msra.mxu0 0
    %2326 = vmatprep.subr.bf16.mxu0 0
    %2327 = vmatpush2.bf16.msra.mxu0 0
    %2328 = vmatprep.subr.bf16.mxu0 0
    %2329 = vmatpush2.bf16.msra.mxu0 0
    %2330 = vmatprep.subr.bf16.mxu0 0
    %2331 = vmatpush2.bf16.msra.mxu0 0
    %2332 = vmatprep.subr.bf16.mxu0 0
    %2333 = vmatpush2.bf16.msra.mxu0 0
    %2334 = vmatprep.subr.bf16.mxu0 0
    %2335 = vmatpush2.bf16.msra.mxu0 0
    %2336 = vmatprep.mubr.bf16.mxu0 0
    %2337 = vmatmul.mubr.bf16.gmra.mxu0 %v1684
    %v2338 = vpop.f32.mrf.mxu0
    %v2339 = vadd.f32 %v2299, %v2338
    %v2340 = vpop.f32.mrf.mxu0
    %v2341 = vpop.f32.mrf.mxu0
    %v2342 = vpop.f32.mrf.mxu0
    %2343 = vdwg.mxu0
    %v2344 = vmax.f32 %v2258, 0.0
    %v2345 = vmax.f32 %v2260, 0.0
    %v2346 = vmax.f32 %v2339, 0.0
    %v2347 = vpack.c.bf16 %v2344, %v2344
    %v2348 = vpack.c.bf16 %v2345, %v2345
    %v2349 = vpack.c.bf16 %v2346, %v2346
    %v2350 = vld [vmem:[#allocation14] sm:$0xf]
    %v2351 = vld [vmem:[#allocation14 + $0x4] sm:$0xf]
    %v2352 = vld [vmem:[#allocation14 + $0x8] sm:$0xf]
    %v2353 = vld [vmem:[#allocation14 + $0xc] sm:$0xf]
    %v2354 = vld [vmem:[#allocation14 + $0x10] sm:$0xf]
    %v2355 = vld [vmem:[#allocation14 + $0x14] sm:$0xf]
    %v2356 = vld [vmem:[#allocation14 + $0x18] sm:$0xf]
    %v2357 = vld [vmem:[#allocation14 + $0x1c] sm:$0xf]
    %v2358 = vld [vmem:[#allocation14 + $0x20] sm:$0xf]
    %v2359 = vld [vmem:[#allocation14 + $0x24] sm:$0xf]
    %v2360 = vld [vmem:[#allocation14 + $0x28] sm:$0xf]
    %v2361 = vld [vmem:[#allocation14 + $0x2c] sm:$0xf]
    %v2362 = vld [vmem:[#allocation14 + $0x30] sm:$0xf]
    %v2363 = vld [vmem:[#allocation14 + $0x34] sm:$0xf]
    %v2364 = vld [vmem:[#allocation14 + $0x38] sm:$0xf]
    %v2365 = vld [vmem:[#allocation14 + $0x3c] sm:$0xf]
    %v2366 = vld [vmem:[#allocation14 + $0x40] sm:$0xf]
    %v2367 = vld [vmem:[#allocation14 + $0x44] sm:$0xf]
    %v2368 = vld [vmem:[#allocation14 + $0x48] sm:$0xf]
    %v2369 = vld [vmem:[#allocation14 + $0x4c] sm:$0xf]
    %v2370 = vld [vmem:[#allocation14 + $0x50] sm:$0xf]
    %v2371 = vld [vmem:[#allocation14 + $0x54] sm:$0xf]
    %v2372 = vld [vmem:[#allocation14 + $0x58] sm:$0xf]
    %v2373 = vld [vmem:[#allocation14 + $0x5c] sm:$0xf]
    %v2374 = vld [vmem:[#allocation14 + $0x60] sm:$0xf]
    %v2375 = vld [vmem:[#allocation14 + $0x64] sm:$0xf]
    %v2376 = vld [vmem:[#allocation14 + $0x68] sm:$0xf]
    %v2377 = vld [vmem:[#allocation14 + $0x6c] sm:$0xf]
    %v2378 = vld [vmem:[#allocation14 + $0x70] sm:$0xf]
    %v2379 = vld [vmem:[#allocation14 + $0x74] sm:$0xf]
    %v2380 = vld [vmem:[#allocation14 + $0x78] sm:$0xf]
    %v2381 = vld [vmem:[#allocation14 + $0x7c] sm:$0xf]
    %v2382 = vld [vmem:[#allocation14 + $0x80] sm:$0xf]
    %v2383 = vld [vmem:[#allocation14 + $0x84] sm:$0xf]
    %v2384 = vld [vmem:[#allocation14 + $0x88] sm:$0xf]
    %v2385 = vld [vmem:[#allocation14 + $0x8c] sm:$0xf]
    %v2386 = vld [vmem:[#allocation14 + $0x90] sm:$0xf]
    %v2387 = vld [vmem:[#allocation14 + $0x94] sm:$0xf]
    %v2388 = vld [vmem:[#allocation14 + $0x98] sm:$0xf]
    %v2389 = vld [vmem:[#allocation14 + $0x9c] sm:$0xf]
    %v2390 = vld [vmem:[#allocation14 + $0xa0] sm:$0xf]
    %v2391 = vld [vmem:[#allocation14 + $0xa4] sm:$0xf]
    %v2392 = vld [vmem:[#allocation14 + $0xa8] sm:$0xf]
    %v2393 = vld [vmem:[#allocation14 + $0xac] sm:$0xf]
    %v2394 = vld [vmem:[#allocation14 + $0xb0] sm:$0xf]
    %v2395 = vld [vmem:[#allocation14 + $0xb4] sm:$0xf]
    %v2396 = vld [vmem:[#allocation14 + $0xb8] sm:$0xf]
    %v2397 = vld [vmem:[#allocation14 + $0xbc] sm:$0xf]
    %v2398 = vld [vmem:[%s12] sm:$0x1]
    %v2400 = vlaneseq
    %v2401 = vshrl.u32 %v2400, 7
    %v2402 = vsub.s32 0, %v2401
    %v2403 = vrot.slane %v2398, %v2402
    %v2453 = vunpack.c.l.b16 %v2350
    %v2454 = vunpack.c.l.b16 %v2351
    %v2455 = vunpack.c.l.b16 %v2352
    %v2456 = vunpack.c.l.b16 %v2353
    %v2457 = vunpack.c.l.b16 %v2354
    %v2458 = vunpack.c.l.b16 %v2355
    %v2459 = vunpack.c.l.b16 %v2356
    %v2460 = vunpack.c.l.b16 %v2357
    %v2461 = vunpack.c.l.b16 %v2358
    %v2462 = vunpack.c.l.b16 %v2359
    %v2463 = vunpack.c.l.b16 %v2360
    %v2464 = vunpack.c.l.b16 %v2361
    %v2465 = vunpack.c.l.b16 %v2362
    %v2466 = vunpack.c.l.b16 %v2363
    %v2467 = vunpack.c.l.b16 %v2364
    %v2468 = vunpack.c.l.b16 %v2365
    %v2469 = vunpack.c.l.b16 %v2366
    %v2470 = vunpack.c.l.b16 %v2367
    %v2471 = vunpack.c.l.b16 %v2368
    %v2472 = vunpack.c.l.b16 %v2369
    %v2473 = vunpack.c.l.b16 %v2370
    %v2474 = vunpack.c.l.b16 %v2371
    %v2475 = vunpack.c.l.b16 %v2372
    %v2476 = vunpack.c.l.b16 %v2373
    %v2477 = vunpack.c.l.b16 %v2374
    %v2478 = vunpack.c.l.b16 %v2375
    %v2479 = vunpack.c.l.b16 %v2376
    %v2480 = vunpack.c.l.b16 %v2377
    %v2481 = vunpack.c.l.b16 %v2378
    %v2482 = vunpack.c.l.b16 %v2379
    %v2483 = vunpack.c.l.b16 %v2380
    %v2484 = vunpack.c.l.b16 %v2381
    %v2485 = vunpack.c.l.b16 %v2382
    %v2486 = vunpack.c.l.b16 %v2383
    %v2487 = vunpack.c.l.b16 %v2384
    %v2488 = vunpack.c.l.b16 %v2385
    %v2489 = vunpack.c.l.b16 %v2386
    %v2490 = vunpack.c.l.b16 %v2387
    %v2491 = vunpack.c.l.b16 %v2388
    %v2492 = vunpack.c.l.b16 %v2389
    %v2493 = vunpack.c.l.b16 %v2390
    %v2494 = vunpack.c.l.b16 %v2391
    %v2495 = vunpack.c.l.b16 %v2392
    %v2496 = vunpack.c.l.b16 %v2393
    %v2497 = vunpack.c.l.b16 %v2394
    %v2498 = vunpack.c.l.b16 %v2395
    %v2499 = vunpack.c.l.b16 %v2396
    %v2500 = vunpack.c.l.b16 %v2397
    %v2501 = vpack.c.b16 %v2454, %v2453
    %v2502 = vpack.c.b16 %v2456, %v2455
    %v2503 = vpack.c.b16 %v2458, %v2457
    %v2504 = vpack.c.b16 %v2460, %v2459
    %v2505 = vpack.c.b16 %v2462, %v2461
    %v2506 = vpack.c.b16 %v2464, %v2463
    %v2507 = vpack.c.b16 %v2466, %v2465
    %v2508 = vpack.c.b16 %v2468, %v2467
    %v2509 = vpack.c.b16 %v2470, %v2469
    %v2510 = vpack.c.b16 %v2472, %v2471
    %v2511 = vpack.c.b16 %v2474, %v2473
    %v2512 = vpack.c.b16 %v2476, %v2475
    %v2513 = vpack.c.b16 %v2478, %v2477
    %v2514 = vpack.c.b16 %v2480, %v2479
    %v2515 = vpack.c.b16 %v2482, %v2481
    %v2516 = vpack.c.b16 %v2484, %v2483
    %v2517 = vpack.c.b16 %v2486, %v2485
    %v2518 = vpack.c.b16 %v2488, %v2487
    %v2519 = vpack.c.b16 %v2490, %v2489
    %v2520 = vpack.c.b16 %v2492, %v2491
    %v2521 = vpack.c.b16 %v2494, %v2493
    %v2522 = vpack.c.b16 %v2496, %v2495
    %v2523 = vpack.c.b16 %v2498, %v2497
    %v2524 = vpack.c.b16 %v2500, %v2499
    %2549 = vmatprep.subr.bf16.mxu0 0
    %2550 = vmatpush1.bf16.msra.mxu0 %v2508
    %2551 = vmatprep.subr.bf16.mxu0 0
    %2552 = vmatpush1.bf16.msra.mxu0 %v2507
    %2553 = vmatprep.subr.bf16.mxu0 0
    %2554 = vmatpush1.bf16.msra.mxu0 %v2506
    %2555 = vmatprep.subr.bf16.mxu0 0
    %2556 = vmatpush1.bf16.msra.mxu0 %v2505
    %2557 = vmatprep.subr.bf16.mxu0 0
    %2558 = vmatpush1.bf16.msra.mxu0 %v2504
    %2559 = vmatprep.subr.bf16.mxu0 0
    %2560 = vmatpush1.bf16.msra.mxu0 %v2503
    %2561 = vmatprep.subr.bf16.mxu0 0
    %2562 = vmatpush1.bf16.msra.mxu0 %v2502
    %2563 = vmatprep.subr.bf16.mxu0 0
    %2564 = vmatpush1.bf16.msra.mxu0 %v2501
    %2565 = vmatprep.subr.bf16.mxu0 0
    %2566 = vmatpush2.bf16.msra.mxu0 %v2516
    %2567 = vmatprep.subr.bf16.mxu0 0
    %2568 = vmatpush2.bf16.msra.mxu0 %v2515
    %2569 = vmatprep.subr.bf16.mxu0 0
    %2570 = vmatpush2.bf16.msra.mxu0 %v2514
    %2571 = vmatprep.subr.bf16.mxu0 0
    %2572 = vmatpush2.bf16.msra.mxu0 %v2513
    %2573 = vmatprep.subr.bf16.mxu0 0
    %2574 = vmatpush2.bf16.msra.mxu0 %v2512
    %2575 = vmatprep.subr.bf16.mxu0 0
    %2576 = vmatpush2.bf16.msra.mxu0 %v2511
    %2577 = vmatprep.subr.bf16.mxu0 0
    %2578 = vmatpush2.bf16.msra.mxu0 %v2510
    %2579 = vmatprep.subr.bf16.mxu0 0
    %2580 = vmatpush2.bf16.msra.mxu0 %v2509
    %2581 = vmatprep.mubr.bf16.mxu0 %v2348
    %2582 = vmatmul.mubr.bf16.gmra.mxu0 %v2347
    %v2583 = vpop.f32.mrf.mxu0
    %v2584 = vadd.f32 %v2403, %v2583
    %v2585 = vpop.f32.mrf.mxu0
    %v2586 = vpop.f32.mrf.mxu0
    %v2587 = vpop.f32.mrf.mxu0
    %2588 = vdwg.mxu0
    %2589 = vmatprep.subr.bf16.mxu0 0
    %2590 = vmatpush1.bf16.msra.mxu0 %v2524
    %2591 = vmatprep.subr.bf16.mxu0 0
    %2592 = vmatpush1.bf16.msra.mxu0 %v2523
    %2593 = vmatprep.subr.bf16.mxu0 0
    %2594 = vmatpush1.bf16.msra.mxu0 %v2522
    %2595 = vmatprep.subr.bf16.mxu0 0
    %2596 = vmatpush1.bf16.msra.mxu0 %v2521
    %2597 = vmatprep.subr.bf16.mxu0 0
    %2598 = vmatpush1.bf16.msra.mxu0 %v2520
    %2599 = vmatprep.subr.bf16.mxu0 0
    %2600 = vmatpush1.bf16.msra.mxu0 %v2519
    %2601 = vmatprep.subr.bf16.mxu0 0
    %2602 = vmatpush1.bf16.msra.mxu0 %v2518
    %2603 = vmatprep.subr.bf16.mxu0 0
    %2604 = vmatpush1.bf16.msra.mxu0 %v2517
    %2605 = vmatprep.subr.bf16.mxu0 0
    %2606 = vmatpush2.bf16.msra.mxu0 0
    %2607 = vmatprep.subr.bf16.mxu0 0
    %2608 = vmatpush2.bf16.msra.mxu0 0
    %2609 = vmatprep.subr.bf16.mxu0 0
    %2610 = vmatpush2.bf16.msra.mxu0 0
    %2611 = vmatprep.subr.bf16.mxu0 0
    %2612 = vmatpush2.bf16.msra.mxu0 0
    %2613 = vmatprep.subr.bf16.mxu0 0
    %2614 = vmatpush2.bf16.msra.mxu0 0
    %2615 = vmatprep.subr.bf16.mxu0 0
    %2616 = vmatpush2.bf16.msra.mxu0 0
    %2617 = vmatprep.subr.bf16.mxu0 0
    %2618 = vmatpush2.bf16.msra.mxu0 0
    %2619 = vmatprep.subr.bf16.mxu0 0
    %2620 = vmatpush2.bf16.msra.mxu0 0
    %2621 = vmatprep.mubr.bf16.mxu0 0
    %2622 = vmatmul.mubr.bf16.gmra.mxu0 %v2349
    %v2623 = vpop.f32.mrf.mxu0
    %v2624 = vadd.f32 %v2584, %v2623
    %v2625 = vpop.f32.mrf.mxu0
    %v2626 = vpop.f32.mrf.mxu0
    %v2627 = vpop.f32.mrf.mxu0
    %2628 = vdwg.mxu0
    %v2629 = vsub.f32 0.0, %v2624
    %v2630 = vmul.f32 %v2629, 1.442695
    %v2631 = vpow.pop %v2630
    %v2632 = vadd.f32 %v2631, 1.0
    %v2633 = vrcp.pop %v2632
    %2634 = vst [vmem:[#allocation16] sm:$0xff] %v2633
    // Predicated region
    $region86: #{tpu_custom_call.1} parent=1 // pred_check
      _
    $region87: #{tpu_custom_call.1} parent=1 // pred_check_branch
      %2636 = sbr.rel (0) target = $region89
    $region88: #{tpu_custom_call.1} parent=1 // pred_region
      %s2638 = ssub.s32 128, 128
      %2639 = vsyncadd [#allocation4], %s2638
      %s2641 = sshll.u32 [#allocation16], 4
      %s2642 = int_to_ptr.vmem [resolvable:$true] %s2641
      %2644 = dma.vmem_to_hbm [thread:$0]  %s2642, 128, %s13, [#allocation4]
    $region89: #{tpu_custom_call.1} parent=1 // pred_fallthru
      _
    // Predicated region
    $region90: #{tpu_custom_call.1} parent=1 // pred_check
      _
    $region91: #{tpu_custom_call.1} parent=1 // pred_check_branch
      %2646 = sbr.rel (0) target = $region93
    $region92: #{tpu_custom_call.1} parent=1 // pred_region
      %2647 = dma.done [#allocation4], 128
    $region93: #{tpu_custom_call.1} parent=1 // pred_fallthru
      _
    %2648 = vsyncpa [#allocation3], 1
    %2649 = vsyncpa [#allocation6], 1
    %2650 = vsyncpa [#allocation9], 1
    %2651 = vsyncpa [#allocation12], 1
    %2652 = vsyncpa [#allocation15], 1
    %2653 = vsyncpa [#allocation4], 1

</llo_original>
